<compile_context>
chip_gen: v5e
topology: v5e:2x2
jax: 0.10.0
libtpu: 0.0.40
codegen_flags: <defaults>
</compile_context>

<pallas_src>
import functools

import jax
import jax.numpy as jnp
from jax.experimental import pallas as pl
from jax.experimental.pallas import tpu as pltpu


def _round_up(x, m):
    return ((x + m - 1) // m) * m


def prior_encoder_kernel(x_init_ref, x_goal_ref,
                         w1a_ref, w1b_ref, b1_ref,
                         w2_ref, b2_ref,
                         w3_ref, b3_ref,
                         out_ref, *, precision):
    cdt = w1a_ref.dtype
    # In-kernel cast to the compute dtype (VPU, free slot). No-op if already cdt.
    x_init = x_init_ref[...].astype(cdt)
    x_goal = x_goal_ref[...].astype(cdt)

    # fc_1: split matmul replaces the lane-axis concat. f32 accumulation on MXU.
    h1 = jnp.dot(x_init, w1a_ref[...],
                 preferred_element_type=jnp.float32, precision=precision)
    h1 = h1 + jnp.dot(x_goal, w1b_ref[...],
                      preferred_element_type=jnp.float32, precision=precision)
    h1 = jnp.maximum(h1 + b1_ref[...].astype(jnp.float32), 0.0)

    # fc_2 + ReLU
    h2 = jnp.dot(h1.astype(w2_ref.dtype), w2_ref[...],
                 preferred_element_type=jnp.float32, precision=precision)
    h2 = jnp.maximum(h2 + b2_ref[...].astype(jnp.float32), 0.0)

    # fc_3 + ReLU
    h3 = jnp.dot(h2.astype(w3_ref.dtype), w3_ref[...],
                 preferred_element_type=jnp.float32, precision=precision)
    h3 = jnp.maximum(h3 + b3_ref[...].astype(jnp.float32), 0.0)

    out_ref[...] = h3.astype(out_ref.dtype)


def prepare_params(params, compute_dtype=jnp.bfloat16):
    """One-time conversion from PyTorch nn.Linear layout ((out,in) weights,
    (out,) biases) to kernel layout: (in,out) weights with W1 split row-wise,
    biases as (1,out) f32 rows. Call once, reuse across forward calls.

    bf16 weights are the default (native single-pass MXU on all generations,
    halves weight DMA); pass compute_dtype=jnp.float32 for exact parity."""
    w1_t = jnp.asarray(params["w1"]).T           # (2E, H)
    e = w1_t.shape[0] // 2
    return {
        "w1a": w1_t[:e].astype(compute_dtype),   # (E, H) — multiplies x_init
        "w1b": w1_t[e:].astype(compute_dtype),   # (E, H) — multiplies x_goal
        "b1": jnp.asarray(params["b1"], jnp.float32).reshape(1, -1),
        "w2": jnp.asarray(params["w2"]).T.astype(compute_dtype),   # (H, H)
        "b2": jnp.asarray(params["b2"], jnp.float32).reshape(1, -1),
        "w3": jnp.asarray(params["w3"]).T.astype(compute_dtype),   # (H, L)
        "b3": jnp.asarray(params["b3"], jnp.float32).reshape(1, -1),
    }


def _pallas_forward(x_init, x_goal, prepped, tb, out_dtype, weight_buffers):
    B, E = x_init.shape
    H = prepped["w1a"].shape[1]
    L = prepped["w3"].shape[1]

    # f32 weights -> exact f32 matmul (PyTorch parity); bf16 -> native MXU path.
    precision = (jax.lax.Precision.HIGHEST
                 if prepped["w1a"].dtype == jnp.float32
                 else jax.lax.Precision.DEFAULT)

    act_spec = pl.BlockSpec((tb, E), lambda i: (i, 0))
    if weight_buffers is None:
        resident = lambda shape: pl.BlockSpec(shape, lambda i: (0, 0))
    else:
        # Block index never changes -> single-buffer the resident operands.
        resident = lambda shape: pl.BlockSpec(
            shape, lambda i: (0, 0), pipeline_mode=pl.Buffered(weight_buffers))

    return pl.pallas_call(
        functools.partial(prior_encoder_kernel, precision=precision),
        out_shape=jax.ShapeDtypeStruct((B, L), out_dtype),
        grid=(pl.cdiv(B, tb),),               # ragged last block handled by Pallas
        in_specs=[
            act_spec,               # state_emb_init tile
            act_spec,               # state_emb_goal tile
            resident((E, H)),       # W1^T top half
            resident((E, H)),       # W1^T bottom half
            resident((1, H)),       # b1
            resident((H, H)),       # W2^T
            resident((1, H)),       # b2
            resident((H, L)),       # W3^T
            resident((1, L)),       # b3
        ],
        out_specs=pl.BlockSpec((tb, L), lambda i: (i, 0)),
        compiler_params=pltpu.CompilerParams(
            dimension_semantics=("parallel",)),   # batch tiles shard across TCs on v7x
    )(x_init, x_goal,
      prepped["w1a"], prepped["w1b"], prepped["b1"],
      prepped["w2"], prepped["b2"],
      prepped["w3"], prepped["b3"])


def prior_encoder_forward(state_emb_init, state_emb_goal, prepped,
                          *, batch_tile=1024, out_dtype=None):
    """Fused PriorEncoder forward. Inputs are passed through in their native
    dtype (no wrapper-side cast, no padding); output dtype defaults to the
    compute dtype of the prepared weights."""
    B, _ = state_emb_init.shape
    out_dtype = out_dtype or prepped["w1a"].dtype

    # Big tiles for HBM efficiency, but always >= 2 grid steps when B > 8 so
    # the parallel batch axis can use both v7x TensorCores.
    tb = min(batch_tile, _round_up(pl.cdiv(B, 2), 8))

    try:
        return _pallas_forward(state_emb_init, state_emb_goal, prepped, tb,
                               out_dtype, weight_buffers=1)
    except Exception:
        # Fallback for jax versions that reject pipeline_mode=pl.Buffered(1)
        # on TPU pallas_call operands; weight double-buffer VMEM is tiny anyway.
        return _pallas_forward(state_emb_init, state_emb_goal, prepped, tb,
                               out_dtype, weight_buffers=None)


def reference_forward(state_emb_init, state_emb_goal, params):
    hi = jax.lax.Precision.HIGHEST
    x = jnp.concatenate([state_emb_init, state_emb_goal], axis=1)
    x = jax.nn.relu(jnp.dot(x, params["w1"].T, precision=hi) + params["b1"])
    x = jax.nn.relu(jnp.dot(x, params["w2"].T, precision=hi) + params["b2"])
    x = jax.nn.relu(jnp.dot(x, params["w3"].T, precision=hi) + params["b3"])
    return x


if __name__ == "__main__":
    # Small shapes consistent with the module:
    #   config.state_emb_size = 64, hidden_size = 128, config.lang_emb_size = 128
    B = 8              # batch
    E = 64             # state_emb_size
    H = 128            # hidden_size
    L = 128            # lang_emb_size

    key = jax.random.PRNGKey(0)
    keys = jax.random.split(key, 8)

    state_emb_init = jax.random.normal(keys[0], (B, E), dtype=jnp.float32)
    state_emb_goal = jax.random.normal(keys[1], (B, E), dtype=jnp.float32)

    # Deterministic synthetic parameters (PyTorch nn.Linear layout: (out, in)).
    params = {
        "w1": jax.random.normal(keys[2], (H, 2 * E), dtype=jnp.float32) * 0.05,
        "b1": jax.random.normal(keys[3], (H,), dtype=jnp.float32) * 0.05,
        "w2": jax.random.normal(keys[4], (H, H), dtype=jnp.float32) * 0.05,
        "b2": jax.random.normal(keys[5], (H,), dtype=jnp.float32) * 0.05,
        "w3": jax.random.normal(keys[6], (L, H), dtype=jnp.float32) * 0.05,
        "b3": jax.random.normal(keys[7], (L,), dtype=jnp.float32) * 0.05,
    }

    ref = reference_forward(state_emb_init, state_emb_goal, params)

    # 1) f32 weight path (Precision.HIGHEST dots) — exact PyTorch parity.
    prepped_f32 = prepare_params(params, compute_dtype=jnp.float32)
    out_f32 = prior_encoder_forward(state_emb_init, state_emb_goal, prepped_f32)
    out_f32 = jax.block_until_ready(out_f32)
    assert out_f32.shape == (B, L) and out_f32.dtype == jnp.float32
    assert jnp.allclose(out_f32, ref, atol=1e-5, rtol=1e-5), "f32 mismatch vs reference"

    # 2) Default bf16 path (bf16 weights + bf16 output, f32 accumulation).
    prepped_bf16 = prepare_params(params)
    out_bf16 = prior_encoder_forward(state_emb_init, state_emb_goal, prepped_bf16)
    out_bf16 = jax.block_until_ready(out_bf16)
    assert out_bf16.dtype == jnp.bfloat16
    assert jnp.allclose(out_bf16.astype(jnp.float32), ref,
                        atol=5e-2, rtol=5e-2), "bf16 mismatch vs reference"

    # 3) Larger, non-multiple batch: exercises the 2-step parallel grid,
    #    resident weights, and the masked ragged last block (no pad / slice).
    Bl = 1000
    big_init = jax.random.normal(keys[0], (Bl, E), dtype=jnp.float32)
    big_goal = jax.random.normal(keys[1], (Bl, E), dtype=jnp.float32)
    ref_big = reference_forward(big_init, big_goal, params)
    out_big = prior_encoder_forward(big_init, big_goal, prepped_f32)
    out_big = jax.block_until_ready(out_big)
    assert out_big.shape == (Bl, L)
    assert jnp.allclose(out_big, ref_big, atol=1e-5, rtol=1e-5), "ragged-tile mismatch"

    print("KERNEL_OK")
</pallas_src>

<mosaic_0001>
module attributes {stable_mosaic.version = 11 : i64} {
  func.func @prior_encoder_kernel(%arg0: i32, %arg1: memref<8x64xf32, #tpu.memory_space<vmem>>, %arg2: memref<8x64xf32, #tpu.memory_space<vmem>>, %arg3: memref<64x128xf32, #tpu.memory_space<vmem>>, %arg4: memref<64x128xf32, #tpu.memory_space<vmem>>, %arg5: memref<1x128xf32, #tpu.memory_space<vmem>>, %arg6: memref<128x128xf32, #tpu.memory_space<vmem>>, %arg7: memref<1x128xf32, #tpu.memory_space<vmem>>, %arg8: memref<128x128xf32, #tpu.memory_space<vmem>>, %arg9: memref<1x128xf32, #tpu.memory_space<vmem>>, %arg10: memref<8x128xf32, #tpu.memory_space<vmem>>) attributes {dimension_semantics = [#tpu.dimension_semantics<parallel>], iteration_bounds = array<i64: 1>, scalar_prefetch = 0 : i64, scratch_operands = 0 : i64, tpu.core_type = #tpu.core_type<tc>, window_params = [{transform_indices = @transform_0, window_bounds = array<i64: 8, 64>}, {transform_indices = @transform_1, window_bounds = array<i64: 8, 64>}, {pipeline_mode = #tpu.pipeline_mode<synchronous>, transform_indices = @transform_2, window_bounds = array<i64: 64, 128>}, {pipeline_mode = #tpu.pipeline_mode<synchronous>, transform_indices = @transform_3, window_bounds = array<i64: 64, 128>}, {pipeline_mode = #tpu.pipeline_mode<synchronous>, transform_indices = @transform_4, window_bounds = array<i64: 1, 128>}, {pipeline_mode = #tpu.pipeline_mode<synchronous>, transform_indices = @transform_5, window_bounds = array<i64: 128, 128>}, {pipeline_mode = #tpu.pipeline_mode<synchronous>, transform_indices = @transform_6, window_bounds = array<i64: 1, 128>}, {pipeline_mode = #tpu.pipeline_mode<synchronous>, transform_indices = @transform_7, window_bounds = array<i64: 128, 128>}, {pipeline_mode = #tpu.pipeline_mode<synchronous>, transform_indices = @transform_8, window_bounds = array<i64: 1, 128>}, {transform_indices = @transform_9, window_bounds = array<i64: 8, 128>}]} {
    %c0 = arith.constant 0 : index
    %c0_0 = arith.constant 0 : index
    %0 = vector.load %arg1[%c0, %c0_0] : memref<8x64xf32, #tpu.memory_space<vmem>>, vector<8x64xf32>
    %c0_1 = arith.constant 0 : index
    %c0_2 = arith.constant 0 : index
    %1 = vector.load %arg2[%c0_1, %c0_2] : memref<8x64xf32, #tpu.memory_space<vmem>>, vector<8x64xf32>
    %c0_3 = arith.constant 0 : index
    %c0_4 = arith.constant 0 : index
    %2 = vector.load %arg3[%c0_3, %c0_4] : memref<64x128xf32, #tpu.memory_space<vmem>>, vector<64x128xf32>
    %cst = arith.constant dense<0.000000e+00> : vector<8x128xf32>
    %3 = tpu.matmul %0, %2, %cst {dimension_numbers = #tpu.dot_dimension_numbers<[1], [0], [0], [1], [0, 0, 1, 1], [], []>, precision = #tpu.contract_precision<fp32>} : vector<8x64xf32>, vector<64x128xf32>, vector<8x128xf32> -> vector<8x128xf32>
    %c0_5 = arith.constant 0 : index
    %c0_6 = arith.constant 0 : index
    %4 = vector.load %arg4[%c0_5, %c0_6] : memref<64x128xf32, #tpu.memory_space<vmem>>, vector<64x128xf32>
    %cst_7 = arith.constant dense<0.000000e+00> : vector<8x128xf32>
    %5 = tpu.matmul %1, %4, %cst_7 {dimension_numbers = #tpu.dot_dimension_numbers<[1], [0], [0], [1], [0, 0, 1, 1], [], []>, precision = #tpu.contract_precision<fp32>} : vector<8x64xf32>, vector<64x128xf32>, vector<8x128xf32> -> vector<8x128xf32>
    %6 = arith.addf %3, %5 : vector<8x128xf32>
    %c0_8 = arith.constant 0 : index
    %c0_9 = arith.constant 0 : index
    %7 = vector.load %arg5[%c0_8, %c0_9] : memref<1x128xf32, #tpu.memory_space<vmem>>, vector<1x128xf32>
    %8 = vector.broadcast %7 : vector<1x128xf32> to vector<8x128xf32>
    %9 = arith.addf %6, %8 : vector<8x128xf32>
    %cst_10 = arith.constant 0.000000e+00 : f32
    %10 = vector.broadcast %cst_10 : f32 to vector<8x128xf32>
    %11 = arith.maximumf %9, %10 : vector<8x128xf32>
    %c0_11 = arith.constant 0 : index
    %c0_12 = arith.constant 0 : index
    %12 = vector.load %arg6[%c0_11, %c0_12] : memref<128x128xf32, #tpu.memory_space<vmem>>, vector<128x128xf32>
    %cst_13 = arith.constant dense<0.000000e+00> : vector<8x128xf32>
    %13 = tpu.matmul %11, %12, %cst_13 {dimension_numbers = #tpu.dot_dimension_numbers<[1], [0], [0], [1], [0, 0, 1, 1], [], []>, precision = #tpu.contract_precision<fp32>} : vector<8x128xf32>, vector<128x128xf32>, vector<8x128xf32> -> vector<8x128xf32>
    %c0_14 = arith.constant 0 : index
    %c0_15 = arith.constant 0 : index
    %14 = vector.load %arg7[%c0_14, %c0_15] : memref<1x128xf32, #tpu.memory_space<vmem>>, vector<1x128xf32>
    %15 = vector.broadcast %14 : vector<1x128xf32> to vector<8x128xf32>
    %16 = arith.addf %13, %15 : vector<8x128xf32>
    %cst_16 = arith.constant 0.000000e+00 : f32
    %17 = vector.broadcast %cst_16 : f32 to vector<8x128xf32>
    %18 = arith.maximumf %16, %17 : vector<8x128xf32>
    %c0_17 = arith.constant 0 : index
    %c0_18 = arith.constant 0 : index
    %19 = vector.load %arg8[%c0_17, %c0_18] : memref<128x128xf32, #tpu.memory_space<vmem>>, vector<128x128xf32>
    %cst_19 = arith.constant dense<0.000000e+00> : vector<8x128xf32>
    %20 = tpu.matmul %18, %19, %cst_19 {dimension_numbers = #tpu.dot_dimension_numbers<[1], [0], [0], [1], [0, 0, 1, 1], [], []>, precision = #tpu.contract_precision<fp32>} : vector<8x128xf32>, vector<128x128xf32>, vector<8x128xf32> -> vector<8x128xf32>
    %c0_20 = arith.constant 0 : index
    %c0_21 = arith.constant 0 : index
    %21 = vector.load %arg9[%c0_20, %c0_21] : memref<1x128xf32, #tpu.memory_space<vmem>>, vector<1x128xf32>
    %22 = vector.broadcast %21 : vector<1x128xf32> to vector<8x128xf32>
    %23 = arith.addf %20, %22 : vector<8x128xf32>
    %cst_22 = arith.constant 0.000000e+00 : f32
    %24 = vector.broadcast %cst_22 : f32 to vector<8x128xf32>
    %25 = arith.maximumf %23, %24 : vector<8x128xf32>
    %c0_23 = arith.constant 0 : index
    %c0_24 = arith.constant 0 : index
    %26 = vector.load %arg10[%c0_23, %c0_24] : memref<8x128xf32, #tpu.memory_space<vmem>>, vector<8x128xf32>
    tpu.vector_store %arg10[%c0_23, %c0_24], %25 {strides = array<i32>} : memref<8x128xf32, #tpu.memory_space<vmem>>, vector<8x128xf32>,
    return
  }
  func.func @transform_0(%arg0: i32) -> (i32, i32) {
    %c0_i32 = arith.constant 0 : i32
    %c0_i32_0 = arith.constant 0 : i32
    return %arg0, %c0_i32 : i32, i32
  }
  func.func @transform_1(%arg0: i32) -> (i32, i32) {
    %c0_i32 = arith.constant 0 : i32
    %c0_i32_0 = arith.constant 0 : i32
    return %arg0, %c0_i32 : i32, i32
  }
  func.func @transform_2(%arg0: i32) -> (i32, i32) {
    %c0_i32 = arith.constant 0 : i32
    %c0_i32_0 = arith.constant 0 : i32
    %c0_i32_1 = arith.constant 0 : i32
    return %c0_i32, %c0_i32_0 : i32, i32
  }
  func.func @transform_3(%arg0: i32) -> (i32, i32) {
    %c0_i32 = arith.constant 0 : i32
    %c0_i32_0 = arith.constant 0 : i32
    %c0_i32_1 = arith.constant 0 : i32
    return %c0_i32, %c0_i32_0 : i32, i32
  }
  func.func @transform_4(%arg0: i32) -> (i32, i32) {
    %c0_i32 = arith.constant 0 : i32
    %c0_i32_0 = arith.constant 0 : i32
    %c0_i32_1 = arith.constant 0 : i32
    return %c0_i32, %c0_i32_0 : i32, i32
  }
  func.func @transform_5(%arg0: i32) -> (i32, i32) {
    %c0_i32 = arith.constant 0 : i32
    %c0_i32_0 = arith.constant 0 : i32
    %c0_i32_1 = arith.constant 0 : i32
    return %c0_i32, %c0_i32_0 : i32, i32
  }
  func.func @transform_6(%arg0: i32) -> (i32, i32) {
    %c0_i32 = arith.constant 0 : i32
    %c0_i32_0 = arith.constant 0 : i32
    %c0_i32_1 = arith.constant 0 : i32
    return %c0_i32, %c0_i32_0 : i32, i32
  }
  func.func @transform_7(%arg0: i32) -> (i32, i32) {
    %c0_i32 = arith.constant 0 : i32
    %c0_i32_0 = arith.constant 0 : i32
    %c0_i32_1 = arith.constant 0 : i32
    return %c0_i32, %c0_i32_0 : i32, i32
  }
  func.func @transform_8(%arg0: i32) -> (i32, i32) {
    %c0_i32 = arith.constant 0 : i32
    %c0_i32_0 = arith.constant 0 : i32
    %c0_i32_1 = arith.constant 0 : i32
    return %c0_i32, %c0_i32_0 : i32, i32
  }
  func.func @transform_9(%arg0: i32) -> (i32, i32) {
    %c0_i32 = arith.constant 0 : i32
    %c0_i32_0 = arith.constant 0 : i32
    return %arg0, %c0_i32 : i32, i32
  }
}

module attributes {stable_mosaic.version = 11 : i64} {
  func.func @prior_encoder_kernel(%arg0: i32, %arg1: memref<8x64xf32, #tpu.memory_space<vmem>>, %arg2: memref<8x64xf32, #tpu.memory_space<vmem>>, %arg3: memref<64x128xf32, #tpu.memory_space<vmem>>, %arg4: memref<64x128xf32, #tpu.memory_space<vmem>>, %arg5: memref<1x128xf32, #tpu.memory_space<vmem>>, %arg6: memref<128x128xf32, #tpu.memory_space<vmem>>, %arg7: memref<1x128xf32, #tpu.memory_space<vmem>>, %arg8: memref<128x128xf32, #tpu.memory_space<vmem>>, %arg9: memref<1x128xf32, #tpu.memory_space<vmem>>, %arg10: memref<8x128xf32, #tpu.memory_space<vmem>>) attributes {dimension_semantics = [#tpu.dimension_semantics<parallel>], iteration_bounds = array<i64: 1>, scalar_prefetch = 0 : i64, scratch_operands = 0 : i64, tpu.core_type = #tpu.core_type<tc>, window_params = [{transform_indices = @transform_0, window_bounds = array<i64: 8, 64>}, {transform_indices = @transform_1, window_bounds = array<i64: 8, 64>}, {pipeline_mode = #tpu.pipeline_mode<synchronous>, transform_indices = @transform_2, window_bounds = array<i64: 64, 128>}, {pipeline_mode = #tpu.pipeline_mode<synchronous>, transform_indices = @transform_3, window_bounds = array<i64: 64, 128>}, {pipeline_mode = #tpu.pipeline_mode<synchronous>, transform_indices = @transform_4, window_bounds = array<i64: 1, 128>}, {pipeline_mode = #tpu.pipeline_mode<synchronous>, transform_indices = @transform_5, window_bounds = array<i64: 128, 128>}, {pipeline_mode = #tpu.pipeline_mode<synchronous>, transform_indices = @transform_6, window_bounds = array<i64: 1, 128>}, {pipeline_mode = #tpu.pipeline_mode<synchronous>, transform_indices = @transform_7, window_bounds = array<i64: 128, 128>}, {pipeline_mode = #tpu.pipeline_mode<synchronous>, transform_indices = @transform_8, window_bounds = array<i64: 1, 128>}, {transform_indices = @transform_9, window_bounds = array<i64: 8, 128>}]} {
    %c0 = arith.constant 0 : index
    %c0_0 = arith.constant 0 : index
    %0 = vector.load %arg1[%c0, %c0_0] : memref<8x64xf32, #tpu.memory_space<vmem>>, vector<8x64xf32>
    %c0_1 = arith.constant 0 : index
    %c0_2 = arith.constant 0 : index
    %1 = vector.load %arg2[%c0_1, %c0_2] : memref<8x64xf32, #tpu.memory_space<vmem>>, vector<8x64xf32>
    %c0_3 = arith.constant 0 : index
    %c0_4 = arith.constant 0 : index
    %2 = vector.load %arg3[%c0_3, %c0_4] : memref<64x128xf32, #tpu.memory_space<vmem>>, vector<64x128xf32>
    %cst = arith.constant dense<0.000000e+00> : vector<8x128xf32>
    %3 = tpu.matmul %0, %2, %cst {dimension_numbers = #tpu.dot_dimension_numbers<[1], [0], [0], [1], [0, 0, 1, 1], [], []>, precision = #tpu.contract_precision<fp32>} : vector<8x64xf32>, vector<64x128xf32>, vector<8x128xf32> -> vector<8x128xf32>
    %c0_5 = arith.constant 0 : index
    %c0_6 = arith.constant 0 : index
    %4 = vector.load %arg4[%c0_5, %c0_6] : memref<64x128xf32, #tpu.memory_space<vmem>>, vector<64x128xf32>
    %cst_7 = arith.constant dense<0.000000e+00> : vector<8x128xf32>
    %5 = tpu.matmul %1, %4, %cst_7 {dimension_numbers = #tpu.dot_dimension_numbers<[1], [0], [0], [1], [0, 0, 1, 1], [], []>, precision = #tpu.contract_precision<fp32>} : vector<8x64xf32>, vector<64x128xf32>, vector<8x128xf32> -> vector<8x128xf32>
    %6 = arith.addf %3, %5 : vector<8x128xf32>
    %c0_8 = arith.constant 0 : index
    %c0_9 = arith.constant 0 : index
    %7 = vector.load %arg5[%c0_8, %c0_9] : memref<1x128xf32, #tpu.memory_space<vmem>>, vector<1x128xf32>
    %8 = vector.broadcast %7 : vector<1x128xf32> to vector<8x128xf32>
    %9 = arith.addf %6, %8 : vector<8x128xf32>
    %cst_10 = arith.constant 0.000000e+00 : f32
    %10 = vector.broadcast %cst_10 : f32 to vector<8x128xf32>
    %11 = arith.maximumf %9, %10 : vector<8x128xf32>
    %c0_11 = arith.constant 0 : index
    %c0_12 = arith.constant 0 : index
    %12 = vector.load %arg6[%c0_11, %c0_12] : memref<128x128xf32, #tpu.memory_space<vmem>>, vector<128x128xf32>
    %cst_13 = arith.constant dense<0.000000e+00> : vector<8x128xf32>
    %13 = tpu.matmul %11, %12, %cst_13 {dimension_numbers = #tpu.dot_dimension_numbers<[1], [0], [0], [1], [0, 0, 1, 1], [], []>, precision = #tpu.contract_precision<fp32>} : vector<8x128xf32>, vector<128x128xf32>, vector<8x128xf32> -> vector<8x128xf32>
    %c0_14 = arith.constant 0 : index
    %c0_15 = arith.constant 0 : index
    %14 = vector.load %arg7[%c0_14, %c0_15] : memref<1x128xf32, #tpu.memory_space<vmem>>, vector<1x128xf32>
    %15 = vector.broadcast %14 : vector<1x128xf32> to vector<8x128xf32>
    %16 = arith.addf %13, %15 : vector<8x128xf32>
    %cst_16 = arith.constant 0.000000e+00 : f32
    %17 = vector.broadcast %cst_16 : f32 to vector<8x128xf32>
    %18 = arith.maximumf %16, %17 : vector<8x128xf32>
    %c0_17 = arith.constant 0 : index
    %c0_18 = arith.constant 0 : index
    %19 = vector.load %arg8[%c0_17, %c0_18] : memref<128x128xf32, #tpu.memory_space<vmem>>, vector<128x128xf32>
    %cst_19 = arith.constant dense<0.000000e+00> : vector<8x128xf32>
    %20 = tpu.matmul %18, %19, %cst_19 {dimension_numbers = #tpu.dot_dimension_numbers<[1], [0], [0], [1], [0, 0, 1, 1], [], []>, precision = #tpu.contract_precision<fp32>} : vector<8x128xf32>, vector<128x128xf32>, vector<8x128xf32> -> vector<8x128xf32>
    %c0_20 = arith.constant 0 : index
    %c0_21 = arith.constant 0 : index
    %21 = vector.load %arg9[%c0_20, %c0_21] : memref<1x128xf32, #tpu.memory_space<vmem>>, vector<1x128xf32>
    %22 = vector.broadcast %21 : vector<1x128xf32> to vector<8x128xf32>
    %23 = arith.addf %20, %22 : vector<8x128xf32>
    %cst_22 = arith.constant 0.000000e+00 : f32
    %24 = vector.broadcast %cst_22 : f32 to vector<8x128xf32>
    %25 = arith.maximumf %23, %24 : vector<8x128xf32>
    %c0_23 = arith.constant 0 : index
    %c0_24 = arith.constant 0 : index
    %26 = vector.load %arg10[%c0_23, %c0_24] : memref<8x128xf32, #tpu.memory_space<vmem>>, vector<8x128xf32>
    tpu.vector_store %arg10[%c0_23, %c0_24], %25 {strides = array<i32>} : memref<8x128xf32, #tpu.memory_space<vmem>>, vector<8x128xf32>,
    return
  }
  func.func @transform_0(%arg0: i32) -> (i32, i32) {
    %c0_i32 = arith.constant 0 : i32
    %c0_i32_0 = arith.constant 0 : i32
    return %arg0, %c0_i32 : i32, i32
  }
  func.func @transform_1(%arg0: i32) -> (i32, i32) {
    %c0_i32 = arith.constant 0 : i32
    %c0_i32_0 = arith.constant 0 : i32
    return %arg0, %c0_i32 : i32, i32
  }
  func.func @transform_2(%arg0: i32) -> (i32, i32) {
    %c0_i32 = arith.constant 0 : i32
    %c0_i32_0 = arith.constant 0 : i32
    %c0_i32_1 = arith.constant 0 : i32
    return %c0_i32, %c0_i32_0 : i32, i32
  }
  func.func @transform_3(%arg0: i32) -> (i32, i32) {
    %c0_i32 = arith.constant 0 : i32
    %c0_i32_0 = arith.constant 0 : i32
    %c0_i32_1 = arith.constant 0 : i32
    return %c0_i32, %c0_i32_0 : i32, i32
  }
  func.func @transform_4(%arg0: i32) -> (i32, i32) {
    %c0_i32 = arith.constant 0 : i32
    %c0_i32_0 = arith.constant 0 : i32
    %c0_i32_1 = arith.constant 0 : i32
    return %c0_i32, %c0_i32_0 : i32, i32
  }
  func.func @transform_5(%arg0: i32) -> (i32, i32) {
    %c0_i32 = arith.constant 0 : i32
    %c0_i32_0 = arith.constant 0 : i32
    %c0_i32_1 = arith.constant 0 : i32
    return %c0_i32, %c0_i32_0 : i32, i32
  }
  func.func @transform_6(%arg0: i32) -> (i32, i32) {
    %c0_i32 = arith.constant 0 : i32
    %c0_i32_0 = arith.constant 0 : i32
    %c0_i32_1 = arith.constant 0 : i32
    return %c0_i32, %c0_i32_0 : i32, i32
  }
  func.func @transform_7(%arg0: i32) -> (i32, i32) {
    %c0_i32 = arith.constant 0 : i32
    %c0_i32_0 = arith.constant 0 : i32
    %c0_i32_1 = arith.constant 0 : i32
    return %c0_i32, %c0_i32_0 : i32, i32
  }
  func.func @transform_8(%arg0: i32) -> (i32, i32) {
    %c0_i32 = arith.constant 0 : i32
    %c0_i32_0 = arith.constant 0 : i32
    %c0_i32_1 = arith.constant 0 : i32
    return %c0_i32, %c0_i32_0 : i32, i32
  }
  func.func @transform_9(%arg0: i32) -> (i32, i32) {
    %c0_i32 = arith.constant 0 : i32
    %c0_i32_0 = arith.constant 0 : i32
    return %arg0, %c0_i32 : i32, i32
  }
}

</mosaic_0001>

<llo_original>
// kernel: tpu_custom_call.1
$region0: #{tpu_custom_call.1}
  #allocation0 [shape = 'u32[]', space=smem, size = 0x4, offset = 0x4, fixed_abs, tag = 'smem constant byte address 0x4 - core index']
  #allocation1 [shape = 'u32[72,128]{1,0:T(1,128)}', space=vmem, size = 0x9000, scoped, tag = 'internal scratch']
  %s0 = inlined_call_operand.hbm [shape: f32[8,64], index: 0, kind: input, shape index: {}]
  %s1 = inlined_call_operand.hbm [shape: f32[8,64], index: 1, kind: input, shape index: {}]
  %s2 = inlined_call_operand.hbm [shape: f32[64,128], index: 2, kind: input, shape index: {}]
  %s3 = inlined_call_operand.hbm [shape: f32[64,128], index: 3, kind: input, shape index: {}]
  %s4 = inlined_call_operand.vmem [shape: f32[1,128], index: 4, kind: input, shape index: {}]
  %s5 = inlined_call_operand.hbm [shape: f32[128,128], index: 5, kind: input, shape index: {}]
  %s6 = inlined_call_operand.vmem [shape: f32[1,128], index: 6, kind: input, shape index: {}]
  %s7 = inlined_call_operand.hbm [shape: f32[128,128], index: 7, kind: input, shape index: {}]
  %s8 = inlined_call_operand.vmem [shape: f32[1,128], index: 8, kind: input, shape index: {}]
  %s9 = inlined_call_operand.hbm [shape: f32[8,128], index: 9, kind: output, shape index: {}]
  %s10 = sld [smem:[#allocation0]]
  $region70: #{tpu_custom_call.1} parent=0
    _
  %s12 = ssub.s32 1, %s10
  %s13 = scalar_select 0, %s12, %s10
  $region1: #{tpu_custom_call.1} parent=0
    #allocation2 [shape = 'u8[4096]{0}', space=vmem, size = 0x1000, scoped, tag = 'input window, operand 0, single buffered']
    #allocation3 [shape = 's32[1]{0}', space=sflag, size = 0x4, scoped, tag = 'scoped memory for tpu_custom_call.1']
    #allocation4 [shape = 's32[1]{0}', space=sflag, size = 0x4, scoped, tag = 'scoped memory for tpu_custom_call.1']
    #allocation5 [shape = 'u8[4096]{0}', space=vmem, size = 0x1000, scoped, tag = 'input window, operand 1, single buffered']
    #allocation6 [shape = 's32[1]{0}', space=sflag, size = 0x4, scoped, tag = 'scoped memory for tpu_custom_call.1']
    #allocation7 [shape = 'u8[32768]{0}', space=vmem, size = 0x8000, scoped, tag = 'input window, operand 2, single buffered']
    #allocation8 [shape = 'u8[32768]{0}', space=vmem, size = 0x8000, scoped, tag = 'input window, operand 3, single buffered']
    #allocation9 [shape = 's32[1]{0}', space=sflag, size = 0x4, scoped, tag = 'scoped memory for tpu_custom_call.1']
    #allocation10 [shape = 'u8[65536]{0}', space=vmem, size = 0x10000, scoped, tag = 'input window, operand 5, single buffered']
    #allocation11 [shape = 'u8[65536]{0}', space=vmem, size = 0x10000, scoped, tag = 'input window, operand 7, single buffered']
    #allocation12 [shape = 's32[1]{0}', space=sflag, size = 0x4, scoped, tag = 'scoped memory for tpu_custom_call.1']
    #allocation13 [shape = 'u8[4096]{0}', space=vmem, size = 0x1000, scoped, tag = 'output window, operand 0, single buffered']
    %14 = vsyncpa [#allocation3], 0
    %15 = vsyncpa [#allocation6], 0
    %16 = vsyncpa [#allocation9], 0
    %17 = vsyncpa [#allocation12], 0
    %18 = vsyncpa [#allocation4], 0
    // Predicated region
    $region2: #{tpu_custom_call.1} parent=1 // pred_check
      _
    $region3: #{tpu_custom_call.1} parent=1 // pred_check_branch
      %20 = sbr.rel (0) target = $region5
    $region4: #{tpu_custom_call.1} parent=1 // pred_region
      %22 = vsyncadd [#allocation3], 0
      %s24 = sshll.u32 %s0, 4
      %s25 = int_to_ptr.hbm [resolvable:$true] %s24
      %s26 = sshll.u32 [#allocation2], 4
      %s27 = int_to_ptr.vmem [resolvable:$true] %s26
      %29 = dma.hbm_to_vmem [thread:$0]  %s25, 128, %s27, [#allocation3]
    $region5: #{tpu_custom_call.1} parent=1 // pred_fallthru
      _
    // Predicated region
    $region6: #{tpu_custom_call.1} parent=1 // pred_check
      _
    $region7: #{tpu_custom_call.1} parent=1 // pred_check_branch
      %31 = sbr.rel (0) target = $region9
    $region8: #{tpu_custom_call.1} parent=1 // pred_region
      %33 = vsyncadd [#allocation6], 0
      %s35 = sshll.u32 %s1, 4
      %s36 = int_to_ptr.hbm [resolvable:$true] %s35
      %s37 = sshll.u32 [#allocation5], 4
      %s38 = int_to_ptr.vmem [resolvable:$true] %s37
      %40 = dma.hbm_to_vmem [thread:$0]  %s36, 128, %s38, [#allocation6]
    $region9: #{tpu_custom_call.1} parent=1 // pred_fallthru
      _
    // Predicated region
    $region10: #{tpu_custom_call.1} parent=1 // pred_check
      _
    $region11: #{tpu_custom_call.1} parent=1 // pred_check_branch
      %42 = sbr.rel (0) target = $region13
    $region12: #{tpu_custom_call.1} parent=1 // pred_region
      %44 = vsyncadd [#allocation6], 0
      %s45 = sshll.u32 %s2, 4
      %s46 = int_to_ptr.hbm [resolvable:$true] %s45
      %s47 = sshll.u32 [#allocation7], 4
      %s48 = int_to_ptr.vmem [resolvable:$true] %s47
      %53 = dma.hbm_to_vmem [thread:$0]  %s46, 1024, %s48, [#allocation6], 128, 128, 8
    $region13: #{tpu_custom_call.1} parent=1 // pred_fallthru
      _
    // Predicated region
    $region14: #{tpu_custom_call.1} parent=1 // pred_check
      _
    $region15: #{tpu_custom_call.1} parent=1 // pred_check_branch
      %55 = sbr.rel (0) target = $region17
    $region16: #{tpu_custom_call.1} parent=1 // pred_region
      %57 = vsyncadd [#allocation9], 0
      %s58 = sshll.u32 %s3, 4
      %s59 = int_to_ptr.hbm [resolvable:$true] %s58
      %s60 = sshll.u32 [#allocation8], 4
      %s61 = int_to_ptr.vmem [resolvable:$true] %s60
      %66 = dma.hbm_to_vmem [thread:$0]  %s59, 1024, %s61, [#allocation9], 128, 128, 8
    $region17: #{tpu_custom_call.1} parent=1 // pred_fallthru
      _
    // Predicated region
    $region18: #{tpu_custom_call.1} parent=1 // pred_check
      _
    $region19: #{tpu_custom_call.1} parent=1 // pred_check_branch
      %68 = sbr.rel (0) target = $region21
    $region20: #{tpu_custom_call.1} parent=1 // pred_region
      _
    $region21: #{tpu_custom_call.1} parent=1 // pred_fallthru
      _
    // Predicated region
    $region22: #{tpu_custom_call.1} parent=1 // pred_check
      _
    $region23: #{tpu_custom_call.1} parent=1 // pred_check_branch
      %70 = sbr.rel (0) target = $region25
    $region24: #{tpu_custom_call.1} parent=1 // pred_region
      %72 = vsyncadd [#allocation9], 0
      %s73 = sshll.u32 %s5, 4
      %s74 = int_to_ptr.hbm [resolvable:$true] %s73
      %s75 = sshll.u32 [#allocation10], 4
      %s76 = int_to_ptr.vmem [resolvable:$true] %s75
      %81 = dma.hbm_to_vmem [thread:$0]  %s74, 2048, %s76, [#allocation9], 128, 128, 8
    $region25: #{tpu_custom_call.1} parent=1 // pred_fallthru
      _
    // Predicated region
    $region26: #{tpu_custom_call.1} parent=1 // pred_check
      _
    $region27: #{tpu_custom_call.1} parent=1 // pred_check_branch
      %83 = sbr.rel (0) target = $region29
    $region28: #{tpu_custom_call.1} parent=1 // pred_region
      _
    $region29: #{tpu_custom_call.1} parent=1 // pred_fallthru
      _
    // Predicated region
    $region30: #{tpu_custom_call.1} parent=1 // pred_check
      _
    $region31: #{tpu_custom_call.1} parent=1 // pred_check_branch
      %85 = sbr.rel (0) target = $region33
    $region32: #{tpu_custom_call.1} parent=1 // pred_region
      %87 = vsyncadd [#allocation12], 0
      %s88 = sshll.u32 %s7, 4
      %s89 = int_to_ptr.hbm [resolvable:$true] %s88
      %s90 = sshll.u32 [#allocation11], 4
      %s91 = int_to_ptr.vmem [resolvable:$true] %s90
      %96 = dma.hbm_to_vmem [thread:$0]  %s89, 2048, %s91, [#allocation12], 128, 128, 8
    $region33: #{tpu_custom_call.1} parent=1 // pred_fallthru
      _
    // Predicated region
    $region34: #{tpu_custom_call.1} parent=1 // pred_check
      _
    $region35: #{tpu_custom_call.1} parent=1 // pred_check_branch
      %98 = sbr.rel (0) target = $region37
    $region36: #{tpu_custom_call.1} parent=1 // pred_region
      _
    $region37: #{tpu_custom_call.1} parent=1 // pred_fallthru
      _
    // Predicated region
    $region38: #{tpu_custom_call.1} parent=1 // pred_check
      _
    $region39: #{tpu_custom_call.1} parent=1 // pred_check_branch
      %100 = sbr.rel (0) target = $region41
    $region40: #{tpu_custom_call.1} parent=1 // pred_region
      %102 = dma.done [#allocation3], 128
    $region41: #{tpu_custom_call.1} parent=1 // pred_fallthru
      _
    // Predicated region
    $region42: #{tpu_custom_call.1} parent=1 // pred_check
      _
    $region43: #{tpu_custom_call.1} parent=1 // pred_check_branch
      %104 = sbr.rel (0) target = $region45
    $region44: #{tpu_custom_call.1} parent=1 // pred_region
      %106 = dma.done [#allocation6], 128
    $region45: #{tpu_custom_call.1} parent=1 // pred_fallthru
      _
    // Predicated region
    $region46: #{tpu_custom_call.1} parent=1 // pred_check
      _
    $region47: #{tpu_custom_call.1} parent=1 // pred_check_branch
      %108 = sbr.rel (0) target = $region49
    $region48: #{tpu_custom_call.1} parent=1 // pred_region
      %110 = dma.done [#allocation6], 1024
    $region49: #{tpu_custom_call.1} parent=1 // pred_fallthru
      _
    // Predicated region
    $region50: #{tpu_custom_call.1} parent=1 // pred_check
      _
    $region51: #{tpu_custom_call.1} parent=1 // pred_check_branch
      %112 = sbr.rel (0) target = $region53
    $region52: #{tpu_custom_call.1} parent=1 // pred_region
      %114 = dma.done [#allocation9], 1024
    $region53: #{tpu_custom_call.1} parent=1 // pred_fallthru
      _
    // Predicated region
    $region54: #{tpu_custom_call.1} parent=1 // pred_check
      _
    $region55: #{tpu_custom_call.1} parent=1 // pred_check_branch
      %116 = sbr.rel (0) target = $region57
    $region56: #{tpu_custom_call.1} parent=1 // pred_region
      %118 = dma.done [#allocation9], 2048
    $region57: #{tpu_custom_call.1} parent=1 // pred_fallthru
      _
    // Predicated region
    $region58: #{tpu_custom_call.1} parent=1 // pred_check
      _
    $region59: #{tpu_custom_call.1} parent=1 // pred_check_branch
      %120 = sbr.rel (0) target = $region61
    $region60: #{tpu_custom_call.1} parent=1 // pred_region
      %122 = dma.done [#allocation12], 2048
    $region61: #{tpu_custom_call.1} parent=1 // pred_fallthru
      _
    %v123 = vld [vmem:[#allocation2] sm:$0xff]
    %v124 = vld [vmem:[#allocation5] sm:$0xff]
    %v125 = vld [vmem:[#allocation7] sm:$0xff]
    %v126 = vld [vmem:[#allocation7 + $0x8] sm:$0xff]
    %v127 = vld [vmem:[#allocation7 + $0x10] sm:$0xff]
    %v128 = vld [vmem:[#allocation7 + $0x18] sm:$0xff]
    %v129 = vld [vmem:[#allocation7 + $0x20] sm:$0xff]
    %v130 = vld [vmem:[#allocation7 + $0x28] sm:$0xff]
    %v131 = vld [vmem:[#allocation7 + $0x30] sm:$0xff]
    %v132 = vld [vmem:[#allocation7 + $0x38] sm:$0xff]
    %v133 = vld [vmem:[#allocation8] sm:$0xff]
    %v134 = vld [vmem:[#allocation8 + $0x8] sm:$0xff]
    %v135 = vld [vmem:[#allocation8 + $0x10] sm:$0xff]
    %v136 = vld [vmem:[#allocation8 + $0x18] sm:$0xff]
    %v137 = vld [vmem:[#allocation8 + $0x20] sm:$0xff]
    %v138 = vld [vmem:[#allocation8 + $0x28] sm:$0xff]
    %v139 = vld [vmem:[#allocation8 + $0x30] sm:$0xff]
    %v140 = vld [vmem:[#allocation8 + $0x38] sm:$0xff]
    %vm141 = vcmask 523264
    %v143 = vsel %vm141, %v124, 0
    %145 = vmatpush.msra.mxu0 0.0
    %146 = vmatpush.msra.mxu0 0.0
    %147 = vmatpush.msra.mxu0 0.0
    %148 = vmatpush.msra.mxu0 0.0
    %149 = vmatpush.msra.mxu0 0.0
    %150 = vmatpush.msra.mxu0 0.0
    %151 = vmatpush.msra.mxu0 0.0
    %152 = vmatpush.msra.mxu0 0.0
    %v153 = vand.u32 %v140, 4294901760
    %154 = vmatpush.msra.mxu0 %v153
    %v155 = vand.u32 %v139, 4294901760
    %156 = vmatpush.msra.mxu0 %v155
    %v157 = vand.u32 %v138, 4294901760
    %158 = vmatpush.msra.mxu0 %v157
    %v159 = vand.u32 %v137, 4294901760
    %160 = vmatpush.msra.mxu0 %v159
    %v161 = vand.u32 %v136, 4294901760
    %162 = vmatpush.msra.mxu0 %v161
    %v163 = vand.u32 %v135, 4294901760
    %164 = vmatpush.msra.mxu0 %v163
    %v165 = vand.u32 %v134, 4294901760
    %166 = vmatpush.msra.mxu0 %v165
    %v167 = vand.u32 %v133, 4294901760
    %168 = vmatpush.msra.mxu0 %v167
    %v169 = vand.u32 %v143, 4294901760
    %v170 = vsub.f32 %v143, %v169
    %v171 = vand.u32 %v170, 4294901760
    %v172 = vsub.f32 %v170, %v171
    %v173 = vand.u32 %v172, 4294901760
    %174 = vmatmul.f32.gmra.mxu0 %v173
    %v175 = vpop.f32.mrf.mxu0
    %v176 = vadd.f32 0.0, %v175
    %177 = vdwg.mxu0
    %178 = vmatpush.msra.mxu0 0.0
    %179 = vmatpush.msra.mxu0 0.0
    %180 = vmatpush.msra.mxu0 0.0
    %181 = vmatpush.msra.mxu0 0.0
    %182 = vmatpush.msra.mxu0 0.0
    %183 = vmatpush.msra.mxu0 0.0
    %184 = vmatpush.msra.mxu0 0.0
    %185 = vmatpush.msra.mxu0 0.0
    %v186 = vand.u32 %v140, 4294901760
    %v187 = vsub.f32 %v140, %v186
    %v188 = vand.u32 %v187, 4294901760
    %v189 = vsub.f32 %v187, %v188
    %v190 = vand.u32 %v189, 4294901760
    %191 = vmatpush.msra.mxu0 %v190
    %v192 = vand.u32 %v139, 4294901760
    %v193 = vsub.f32 %v139, %v192
    %v194 = vand.u32 %v193, 4294901760
    %v195 = vsub.f32 %v193, %v194
    %v196 = vand.u32 %v195, 4294901760
    %197 = vmatpush.msra.mxu0 %v196
    %v198 = vand.u32 %v138, 4294901760
    %v199 = vsub.f32 %v138, %v198
    %v200 = vand.u32 %v199, 4294901760
    %v201 = vsub.f32 %v199, %v200
    %v202 = vand.u32 %v201, 4294901760
    %203 = vmatpush.msra.mxu0 %v202
    %v204 = vand.u32 %v137, 4294901760
    %v205 = vsub.f32 %v137, %v204
    %v206 = vand.u32 %v205, 4294901760
    %v207 = vsub.f32 %v205, %v206
    %v208 = vand.u32 %v207, 4294901760
    %209 = vmatpush.msra.mxu0 %v208
    %v210 = vand.u32 %v136, 4294901760
    %v211 = vsub.f32 %v136, %v210
    %v212 = vand.u32 %v211, 4294901760
    %v213 = vsub.f32 %v211, %v212
    %v214 = vand.u32 %v213, 4294901760
    %215 = vmatpush.msra.mxu0 %v214
    %v216 = vand.u32 %v135, 4294901760
    %v217 = vsub.f32 %v135, %v216
    %v218 = vand.u32 %v217, 4294901760
    %v219 = vsub.f32 %v217, %v218
    %v220 = vand.u32 %v219, 4294901760
    %221 = vmatpush.msra.mxu0 %v220
    %v222 = vand.u32 %v134, 4294901760
    %v223 = vsub.f32 %v134, %v222
    %v224 = vand.u32 %v223, 4294901760
    %v225 = vsub.f32 %v223, %v224
    %v226 = vand.u32 %v225, 4294901760
    %227 = vmatpush.msra.mxu0 %v226
    %v228 = vand.u32 %v133, 4294901760
    %v229 = vsub.f32 %v133, %v228
    %v230 = vand.u32 %v229, 4294901760
    %v231 = vsub.f32 %v229, %v230
    %v232 = vand.u32 %v231, 4294901760
    %233 = vmatpush.msra.mxu0 %v232
    %v234 = vand.u32 %v143, 4294901760
    %235 = vmatmul.f32.gmra.mxu0 %v234
    %v236 = vpop.f32.mrf.mxu0
    %v237 = vadd.f32 %v176, %v236
    %238 = vdwg.mxu0
    %239 = vmatpush.msra.mxu0 0.0
    %240 = vmatpush.msra.mxu0 0.0
    %241 = vmatpush.msra.mxu0 0.0
    %242 = vmatpush.msra.mxu0 0.0
    %243 = vmatpush.msra.mxu0 0.0
    %244 = vmatpush.msra.mxu0 0.0
    %245 = vmatpush.msra.mxu0 0.0
    %246 = vmatpush.msra.mxu0 0.0
    %v247 = vand.u32 %v140, 4294901760
    %v248 = vsub.f32 %v140, %v247
    %249 = vmatpush.msra.mxu0 %v248
    %v250 = vand.u32 %v139, 4294901760
    %v251 = vsub.f32 %v139, %v250
    %252 = vmatpush.msra.mxu0 %v251
    %v253 = vand.u32 %v138, 4294901760
    %v254 = vsub.f32 %v138, %v253
    %255 = vmatpush.msra.mxu0 %v254
    %v256 = vand.u32 %v137, 4294901760
    %v257 = vsub.f32 %v137, %v256
    %258 = vmatpush.msra.mxu0 %v257
    %v259 = vand.u32 %v136, 4294901760
    %v260 = vsub.f32 %v136, %v259
    %261 = vmatpush.msra.mxu0 %v260
    %v262 = vand.u32 %v135, 4294901760
    %v263 = vsub.f32 %v135, %v262
    %264 = vmatpush.msra.mxu0 %v263
    %v265 = vand.u32 %v134, 4294901760
    %v266 = vsub.f32 %v134, %v265
    %267 = vmatpush.msra.mxu0 %v266
    %v268 = vand.u32 %v133, 4294901760
    %v269 = vsub.f32 %v133, %v268
    %270 = vmatpush.msra.mxu0 %v269
    %v271 = vand.u32 %v143, 4294901760
    %v272 = vsub.f32 %v143, %v271
    %273 = vmatmul.f32.gmra.mxu0 %v272
    %v274 = vpop.f32.mrf.mxu0
    %v275 = vadd.f32 %v237, %v274
    %276 = vdwg.mxu0
    %277 = vmatpush.msra.mxu0 0.0
    %278 = vmatpush.msra.mxu0 0.0
    %279 = vmatpush.msra.mxu0 0.0
    %280 = vmatpush.msra.mxu0 0.0
    %281 = vmatpush.msra.mxu0 0.0
    %282 = vmatpush.msra.mxu0 0.0
    %283 = vmatpush.msra.mxu0 0.0
    %284 = vmatpush.msra.mxu0 0.0
    %v285 = vand.u32 %v140, 4294901760
    %286 = vmatpush.msra.mxu0 %v285
    %v287 = vand.u32 %v139, 4294901760
    %288 = vmatpush.msra.mxu0 %v287
    %v289 = vand.u32 %v138, 4294901760
    %290 = vmatpush.msra.mxu0 %v289
    %v291 = vand.u32 %v137, 4294901760
    %292 = vmatpush.msra.mxu0 %v291
    %v293 = vand.u32 %v136, 4294901760
    %294 = vmatpush.msra.mxu0 %v293
    %v295 = vand.u32 %v135, 4294901760
    %296 = vmatpush.msra.mxu0 %v295
    %v297 = vand.u32 %v134, 4294901760
    %298 = vmatpush.msra.mxu0 %v297
    %v299 = vand.u32 %v133, 4294901760
    %300 = vmatpush.msra.mxu0 %v299
    %v301 = vand.u32 %v143, 4294901760
    %v302 = vsub.f32 %v143, %v301
    %v303 = vand.u32 %v302, 4294901760
    %304 = vmatmul.f32.gmra.mxu0 %v303
    %v305 = vpop.f32.mrf.mxu0
    %v306 = vadd.f32 %v275, %v305
    %307 = vdwg.mxu0
    %308 = vmatpush.msra.mxu0 0.0
    %309 = vmatpush.msra.mxu0 0.0
    %310 = vmatpush.msra.mxu0 0.0
    %311 = vmatpush.msra.mxu0 0.0
    %312 = vmatpush.msra.mxu0 0.0
    %313 = vmatpush.msra.mxu0 0.0
    %314 = vmatpush.msra.mxu0 0.0
    %315 = vmatpush.msra.mxu0 0.0
    %v316 = vand.u32 %v140, 4294901760
    %v317 = vsub.f32 %v140, %v316
    %v318 = vand.u32 %v317, 4294901760
    %319 = vmatpush.msra.mxu0 %v318
    %v320 = vand.u32 %v139, 4294901760
    %v321 = vsub.f32 %v139, %v320
    %v322 = vand.u32 %v321, 4294901760
    %323 = vmatpush.msra.mxu0 %v322
    %v324 = vand.u32 %v138, 4294901760
    %v325 = vsub.f32 %v138, %v324
    %v326 = vand.u32 %v325, 4294901760
    %327 = vmatpush.msra.mxu0 %v326
    %v328 = vand.u32 %v137, 4294901760
    %v329 = vsub.f32 %v137, %v328
    %v330 = vand.u32 %v329, 4294901760
    %331 = vmatpush.msra.mxu0 %v330
    %v332 = vand.u32 %v136, 4294901760
    %v333 = vsub.f32 %v136, %v332
    %v334 = vand.u32 %v333, 4294901760
    %335 = vmatpush.msra.mxu0 %v334
    %v336 = vand.u32 %v135, 4294901760
    %v337 = vsub.f32 %v135, %v336
    %v338 = vand.u32 %v337, 4294901760
    %339 = vmatpush.msra.mxu0 %v338
    %v340 = vand.u32 %v134, 4294901760
    %v341 = vsub.f32 %v134, %v340
    %v342 = vand.u32 %v341, 4294901760
    %343 = vmatpush.msra.mxu0 %v342
    %v344 = vand.u32 %v133, 4294901760
    %v345 = vsub.f32 %v133, %v344
    %v346 = vand.u32 %v345, 4294901760
    %347 = vmatpush.msra.mxu0 %v346
    %v348 = vand.u32 %v143, 4294901760
    %349 = vmatmul.f32.gmra.mxu0 %v348
    %v350 = vpop.f32.mrf.mxu0
    %v351 = vadd.f32 %v306, %v350
    %352 = vdwg.mxu0
    %353 = vmatpush.msra.mxu0 0.0
    %354 = vmatpush.msra.mxu0 0.0
    %355 = vmatpush.msra.mxu0 0.0
    %356 = vmatpush.msra.mxu0 0.0
    %357 = vmatpush.msra.mxu0 0.0
    %358 = vmatpush.msra.mxu0 0.0
    %359 = vmatpush.msra.mxu0 0.0
    %360 = vmatpush.msra.mxu0 0.0
    %v361 = vand.u32 %v140, 4294901760
    %362 = vmatpush.msra.mxu0 %v361
    %v363 = vand.u32 %v139, 4294901760
    %364 = vmatpush.msra.mxu0 %v363
    %v365 = vand.u32 %v138, 4294901760
    %366 = vmatpush.msra.mxu0 %v365
    %v367 = vand.u32 %v137, 4294901760
    %368 = vmatpush.msra.mxu0 %v367
    %v369 = vand.u32 %v136, 4294901760
    %370 = vmatpush.msra.mxu0 %v369
    %v371 = vand.u32 %v135, 4294901760
    %372 = vmatpush.msra.mxu0 %v371
    %v373 = vand.u32 %v134, 4294901760
    %374 = vmatpush.msra.mxu0 %v373
    %v375 = vand.u32 %v133, 4294901760
    %376 = vmatpush.msra.mxu0 %v375
    %v377 = vand.u32 %v143, 4294901760
    %378 = vmatmul.f32.gmra.mxu0 %v377
    %v379 = vpop.f32.mrf.mxu0
    %v380 = vadd.f32 %v351, %v379
    %381 = vdwg.mxu0
    %v383 = vsel %vm141, %v123, 0
    %385 = vmatpush.msra.mxu0 0.0
    %386 = vmatpush.msra.mxu0 0.0
    %387 = vmatpush.msra.mxu0 0.0
    %388 = vmatpush.msra.mxu0 0.0
    %389 = vmatpush.msra.mxu0 0.0
    %390 = vmatpush.msra.mxu0 0.0
    %391 = vmatpush.msra.mxu0 0.0
    %392 = vmatpush.msra.mxu0 0.0
    %v393 = vand.u32 %v132, 4294901760
    %394 = vmatpush.msra.mxu0 %v393
    %v395 = vand.u32 %v131, 4294901760
    %396 = vmatpush.msra.mxu0 %v395
    %v397 = vand.u32 %v130, 4294901760
    %398 = vmatpush.msra.mxu0 %v397
    %v399 = vand.u32 %v129, 4294901760
    %400 = vmatpush.msra.mxu0 %v399
    %v401 = vand.u32 %v128, 4294901760
    %402 = vmatpush.msra.mxu0 %v401
    %v403 = vand.u32 %v127, 4294901760
    %404 = vmatpush.msra.mxu0 %v403
    %v405 = vand.u32 %v126, 4294901760
    %406 = vmatpush.msra.mxu0 %v405
    %v407 = vand.u32 %v125, 4294901760
    %408 = vmatpush.msra.mxu0 %v407
    %v409 = vand.u32 %v383, 4294901760
    %v410 = vsub.f32 %v383, %v409
    %v411 = vand.u32 %v410, 4294901760
    %v412 = vsub.f32 %v410, %v411
    %v413 = vand.u32 %v412, 4294901760
    %414 = vmatmul.f32.gmra.mxu0 %v413
    %v415 = vpop.f32.mrf.mxu0
    %v416 = vadd.f32 %v380, %v415
    %417 = vdwg.mxu0
    %418 = vmatpush.msra.mxu0 0.0
    %419 = vmatpush.msra.mxu0 0.0
    %420 = vmatpush.msra.mxu0 0.0
    %421 = vmatpush.msra.mxu0 0.0
    %422 = vmatpush.msra.mxu0 0.0
    %423 = vmatpush.msra.mxu0 0.0
    %424 = vmatpush.msra.mxu0 0.0
    %425 = vmatpush.msra.mxu0 0.0
    %v426 = vand.u32 %v132, 4294901760
    %v427 = vsub.f32 %v132, %v426
    %v428 = vand.u32 %v427, 4294901760
    %v429 = vsub.f32 %v427, %v428
    %v430 = vand.u32 %v429, 4294901760
    %431 = vmatpush.msra.mxu0 %v430
    %v432 = vand.u32 %v131, 4294901760
    %v433 = vsub.f32 %v131, %v432
    %v434 = vand.u32 %v433, 4294901760
    %v435 = vsub.f32 %v433, %v434
    %v436 = vand.u32 %v435, 4294901760
    %437 = vmatpush.msra.mxu0 %v436
    %v438 = vand.u32 %v130, 4294901760
    %v439 = vsub.f32 %v130, %v438
    %v440 = vand.u32 %v439, 4294901760
    %v441 = vsub.f32 %v439, %v440
    %v442 = vand.u32 %v441, 4294901760
    %443 = vmatpush.msra.mxu0 %v442
    %v444 = vand.u32 %v129, 4294901760
    %v445 = vsub.f32 %v129, %v444
    %v446 = vand.u32 %v445, 4294901760
    %v447 = vsub.f32 %v445, %v446
    %v448 = vand.u32 %v447, 4294901760
    %449 = vmatpush.msra.mxu0 %v448
    %v450 = vand.u32 %v128, 4294901760
    %v451 = vsub.f32 %v128, %v450
    %v452 = vand.u32 %v451, 4294901760
    %v453 = vsub.f32 %v451, %v452
    %v454 = vand.u32 %v453, 4294901760
    %455 = vmatpush.msra.mxu0 %v454
    %v456 = vand.u32 %v127, 4294901760
    %v457 = vsub.f32 %v127, %v456
    %v458 = vand.u32 %v457, 4294901760
    %v459 = vsub.f32 %v457, %v458
    %v460 = vand.u32 %v459, 4294901760
    %461 = vmatpush.msra.mxu0 %v460
    %v462 = vand.u32 %v126, 4294901760
    %v463 = vsub.f32 %v126, %v462
    %v464 = vand.u32 %v463, 4294901760
    %v465 = vsub.f32 %v463, %v464
    %v466 = vand.u32 %v465, 4294901760
    %467 = vmatpush.msra.mxu0 %v466
    %v468 = vand.u32 %v125, 4294901760
    %v469 = vsub.f32 %v125, %v468
    %v470 = vand.u32 %v469, 4294901760
    %v471 = vsub.f32 %v469, %v470
    %v472 = vand.u32 %v471, 4294901760
    %473 = vmatpush.msra.mxu0 %v472
    %v474 = vand.u32 %v383, 4294901760
    %475 = vmatmul.f32.gmra.mxu0 %v474
    %v476 = vpop.f32.mrf.mxu0
    %v477 = vadd.f32 %v416, %v476
    %478 = vdwg.mxu0
    %479 = vmatpush.msra.mxu0 0.0
    %480 = vmatpush.msra.mxu0 0.0
    %481 = vmatpush.msra.mxu0 0.0
    %482 = vmatpush.msra.mxu0 0.0
    %483 = vmatpush.msra.mxu0 0.0
    %484 = vmatpush.msra.mxu0 0.0
    %485 = vmatpush.msra.mxu0 0.0
    %486 = vmatpush.msra.mxu0 0.0
    %v487 = vand.u32 %v132, 4294901760
    %v488 = vsub.f32 %v132, %v487
    %489 = vmatpush.msra.mxu0 %v488
    %v490 = vand.u32 %v131, 4294901760
    %v491 = vsub.f32 %v131, %v490
    %492 = vmatpush.msra.mxu0 %v491
    %v493 = vand.u32 %v130, 4294901760
    %v494 = vsub.f32 %v130, %v493
    %495 = vmatpush.msra.mxu0 %v494
    %v496 = vand.u32 %v129, 4294901760
    %v497 = vsub.f32 %v129, %v496
    %498 = vmatpush.msra.mxu0 %v497
    %v499 = vand.u32 %v128, 4294901760
    %v500 = vsub.f32 %v128, %v499
    %501 = vmatpush.msra.mxu0 %v500
    %v502 = vand.u32 %v127, 4294901760
    %v503 = vsub.f32 %v127, %v502
    %504 = vmatpush.msra.mxu0 %v503
    %v505 = vand.u32 %v126, 4294901760
    %v506 = vsub.f32 %v126, %v505
    %507 = vmatpush.msra.mxu0 %v506
    %v508 = vand.u32 %v125, 4294901760
    %v509 = vsub.f32 %v125, %v508
    %510 = vmatpush.msra.mxu0 %v509
    %v511 = vand.u32 %v383, 4294901760
    %v512 = vsub.f32 %v383, %v511
    %513 = vmatmul.f32.gmra.mxu0 %v512
    %v514 = vpop.f32.mrf.mxu0
    %v515 = vadd.f32 %v477, %v514
    %516 = vdwg.mxu0
    %517 = vmatpush.msra.mxu0 0.0
    %518 = vmatpush.msra.mxu0 0.0
    %519 = vmatpush.msra.mxu0 0.0
    %520 = vmatpush.msra.mxu0 0.0
    %521 = vmatpush.msra.mxu0 0.0
    %522 = vmatpush.msra.mxu0 0.0
    %523 = vmatpush.msra.mxu0 0.0
    %524 = vmatpush.msra.mxu0 0.0
    %v525 = vand.u32 %v132, 4294901760
    %526 = vmatpush.msra.mxu0 %v525
    %v527 = vand.u32 %v131, 4294901760
    %528 = vmatpush.msra.mxu0 %v527
    %v529 = vand.u32 %v130, 4294901760
    %530 = vmatpush.msra.mxu0 %v529
    %v531 = vand.u32 %v129, 4294901760
    %532 = vmatpush.msra.mxu0 %v531
    %v533 = vand.u32 %v128, 4294901760
    %534 = vmatpush.msra.mxu0 %v533
    %v535 = vand.u32 %v127, 4294901760
    %536 = vmatpush.msra.mxu0 %v535
    %v537 = vand.u32 %v126, 4294901760
    %538 = vmatpush.msra.mxu0 %v537
    %v539 = vand.u32 %v125, 4294901760
    %540 = vmatpush.msra.mxu0 %v539
    %v541 = vand.u32 %v383, 4294901760
    %v542 = vsub.f32 %v383, %v541
    %v543 = vand.u32 %v542, 4294901760
    %544 = vmatmul.f32.gmra.mxu0 %v543
    %v545 = vpop.f32.mrf.mxu0
    %v546 = vadd.f32 %v515, %v545
    %547 = vdwg.mxu0
    %548 = vmatpush.msra.mxu0 0.0
    %549 = vmatpush.msra.mxu0 0.0
    %550 = vmatpush.msra.mxu0 0.0
    %551 = vmatpush.msra.mxu0 0.0
    %552 = vmatpush.msra.mxu0 0.0
    %553 = vmatpush.msra.mxu0 0.0
    %554 = vmatpush.msra.mxu0 0.0
    %555 = vmatpush.msra.mxu0 0.0
    %v556 = vand.u32 %v132, 4294901760
    %v557 = vsub.f32 %v132, %v556
    %v558 = vand.u32 %v557, 4294901760
    %559 = vmatpush.msra.mxu0 %v558
    %v560 = vand.u32 %v131, 4294901760
    %v561 = vsub.f32 %v131, %v560
    %v562 = vand.u32 %v561, 4294901760
    %563 = vmatpush.msra.mxu0 %v562
    %v564 = vand.u32 %v130, 4294901760
    %v565 = vsub.f32 %v130, %v564
    %v566 = vand.u32 %v565, 4294901760
    %567 = vmatpush.msra.mxu0 %v566
    %v568 = vand.u32 %v129, 4294901760
    %v569 = vsub.f32 %v129, %v568
    %v570 = vand.u32 %v569, 4294901760
    %571 = vmatpush.msra.mxu0 %v570
    %v572 = vand.u32 %v128, 4294901760
    %v573 = vsub.f32 %v128, %v572
    %v574 = vand.u32 %v573, 4294901760
    %575 = vmatpush.msra.mxu0 %v574
    %v576 = vand.u32 %v127, 4294901760
    %v577 = vsub.f32 %v127, %v576
    %v578 = vand.u32 %v577, 4294901760
    %579 = vmatpush.msra.mxu0 %v578
    %v580 = vand.u32 %v126, 4294901760
    %v581 = vsub.f32 %v126, %v580
    %v582 = vand.u32 %v581, 4294901760
    %583 = vmatpush.msra.mxu0 %v582
    %v584 = vand.u32 %v125, 4294901760
    %v585 = vsub.f32 %v125, %v584
    %v586 = vand.u32 %v585, 4294901760
    %587 = vmatpush.msra.mxu0 %v586
    %v588 = vand.u32 %v383, 4294901760
    %589 = vmatmul.f32.gmra.mxu0 %v588
    %v590 = vpop.f32.mrf.mxu0
    %v591 = vadd.f32 %v546, %v590
    %592 = vdwg.mxu0
    %593 = vmatpush.msra.mxu0 0.0
    %594 = vmatpush.msra.mxu0 0.0
    %595 = vmatpush.msra.mxu0 0.0
    %596 = vmatpush.msra.mxu0 0.0
    %597 = vmatpush.msra.mxu0 0.0
    %598 = vmatpush.msra.mxu0 0.0
    %599 = vmatpush.msra.mxu0 0.0
    %600 = vmatpush.msra.mxu0 0.0
    %v601 = vand.u32 %v132, 4294901760
    %602 = vmatpush.msra.mxu0 %v601
    %v603 = vand.u32 %v131, 4294901760
    %604 = vmatpush.msra.mxu0 %v603
    %v605 = vand.u32 %v130, 4294901760
    %606 = vmatpush.msra.mxu0 %v605
    %v607 = vand.u32 %v129, 4294901760
    %608 = vmatpush.msra.mxu0 %v607
    %v609 = vand.u32 %v128, 4294901760
    %610 = vmatpush.msra.mxu0 %v609
    %v611 = vand.u32 %v127, 4294901760
    %612 = vmatpush.msra.mxu0 %v611
    %v613 = vand.u32 %v126, 4294901760
    %614 = vmatpush.msra.mxu0 %v613
    %v615 = vand.u32 %v125, 4294901760
    %616 = vmatpush.msra.mxu0 %v615
    %v617 = vand.u32 %v383, 4294901760
    %618 = vmatmul.f32.gmra.mxu0 %v617
    %v619 = vpop.f32.mrf.mxu0
    %v620 = vadd.f32 %v591, %v619
    %621 = vdwg.mxu0
    %v622 = vld [vmem:[%s4] sm:$0x1]
    %v624 = vperm.slane %v622, 0
    %v626 = vadd.f32 %v620, %v624
    %v627 = vmax.f32 %v626, 0.0
    %v628 = vld [vmem:[#allocation10] sm:$0xff]
    %v629 = vld [vmem:[#allocation10 + $0x8] sm:$0xff]
    %v630 = vld [vmem:[#allocation10 + $0x10] sm:$0xff]
    %v631 = vld [vmem:[#allocation10 + $0x18] sm:$0xff]
    %v632 = vld [vmem:[#allocation10 + $0x20] sm:$0xff]
    %v633 = vld [vmem:[#allocation10 + $0x28] sm:$0xff]
    %v634 = vld [vmem:[#allocation10 + $0x30] sm:$0xff]
    %v635 = vld [vmem:[#allocation10 + $0x38] sm:$0xff]
    %v636 = vld [vmem:[#allocation10 + $0x40] sm:$0xff]
    %v637 = vld [vmem:[#allocation10 + $0x48] sm:$0xff]
    %v638 = vld [vmem:[#allocation10 + $0x50] sm:$0xff]
    %v639 = vld [vmem:[#allocation10 + $0x58] sm:$0xff]
    %v640 = vld [vmem:[#allocation10 + $0x60] sm:$0xff]
    %v641 = vld [vmem:[#allocation10 + $0x68] sm:$0xff]
    %v642 = vld [vmem:[#allocation10 + $0x70] sm:$0xff]
    %v643 = vld [vmem:[#allocation10 + $0x78] sm:$0xff]
    %v644 = vld [vmem:[%s6] sm:$0x1]
    %v646 = vperm.slane %v644, 0
    %v648 = vand.u32 %v643, 4294901760
    %649 = vmatpush.msra.mxu0 %v648
    %v650 = vand.u32 %v642, 4294901760
    %651 = vmatpush.msra.mxu0 %v650
    %v652 = vand.u32 %v641, 4294901760
    %653 = vmatpush.msra.mxu0 %v652
    %v654 = vand.u32 %v640, 4294901760
    %655 = vmatpush.msra.mxu0 %v654
    %v656 = vand.u32 %v639, 4294901760
    %657 = vmatpush.msra.mxu0 %v656
    %v658 = vand.u32 %v638, 4294901760
    %659 = vmatpush.msra.mxu0 %v658
    %v660 = vand.u32 %v637, 4294901760
    %661 = vmatpush.msra.mxu0 %v660
    %v662 = vand.u32 %v636, 4294901760
    %663 = vmatpush.msra.mxu0 %v662
    %v664 = vand.u32 %v635, 4294901760
    %665 = vmatpush.msra.mxu0 %v664
    %v666 = vand.u32 %v634, 4294901760
    %667 = vmatpush.msra.mxu0 %v666
    %v668 = vand.u32 %v633, 4294901760
    %669 = vmatpush.msra.mxu0 %v668
    %v670 = vand.u32 %v632, 4294901760
    %671 = vmatpush.msra.mxu0 %v670
    %v672 = vand.u32 %v631, 4294901760
    %673 = vmatpush.msra.mxu0 %v672
    %v674 = vand.u32 %v630, 4294901760
    %675 = vmatpush.msra.mxu0 %v674
    %v676 = vand.u32 %v629, 4294901760
    %677 = vmatpush.msra.mxu0 %v676
    %v678 = vand.u32 %v628, 4294901760
    %679 = vmatpush.msra.mxu0 %v678
    %v680 = vand.u32 %v627, 4294901760
    %v681 = vsub.f32 %v627, %v680
    %v682 = vand.u32 %v681, 4294901760
    %v683 = vsub.f32 %v681, %v682
    %v684 = vand.u32 %v683, 4294901760
    %685 = vmatmul.f32.gmra.mxu0 %v684
    %v686 = vpop.f32.mrf.mxu0
    %v687 = vadd.f32 %v646, %v686
    %688 = vdwg.mxu0
    %v689 = vand.u32 %v643, 4294901760
    %v690 = vsub.f32 %v643, %v689
    %v691 = vand.u32 %v690, 4294901760
    %v692 = vsub.f32 %v690, %v691
    %v693 = vand.u32 %v692, 4294901760
    %694 = vmatpush.msra.mxu0 %v693
    %v695 = vand.u32 %v642, 4294901760
    %v696 = vsub.f32 %v642, %v695
    %v697 = vand.u32 %v696, 4294901760
    %v698 = vsub.f32 %v696, %v697
    %v699 = vand.u32 %v698, 4294901760
    %700 = vmatpush.msra.mxu0 %v699
    %v701 = vand.u32 %v641, 4294901760
    %v702 = vsub.f32 %v641, %v701
    %v703 = vand.u32 %v702, 4294901760
    %v704 = vsub.f32 %v702, %v703
    %v705 = vand.u32 %v704, 4294901760
    %706 = vmatpush.msra.mxu0 %v705
    %v707 = vand.u32 %v640, 4294901760
    %v708 = vsub.f32 %v640, %v707
    %v709 = vand.u32 %v708, 4294901760
    %v710 = vsub.f32 %v708, %v709
    %v711 = vand.u32 %v710, 4294901760
    %712 = vmatpush.msra.mxu0 %v711
    %v713 = vand.u32 %v639, 4294901760
    %v714 = vsub.f32 %v639, %v713
    %v715 = vand.u32 %v714, 4294901760
    %v716 = vsub.f32 %v714, %v715
    %v717 = vand.u32 %v716, 4294901760
    %718 = vmatpush.msra.mxu0 %v717
    %v719 = vand.u32 %v638, 4294901760
    %v720 = vsub.f32 %v638, %v719
    %v721 = vand.u32 %v720, 4294901760
    %v722 = vsub.f32 %v720, %v721
    %v723 = vand.u32 %v722, 4294901760
    %724 = vmatpush.msra.mxu0 %v723
    %v725 = vand.u32 %v637, 4294901760
    %v726 = vsub.f32 %v637, %v725
    %v727 = vand.u32 %v726, 4294901760
    %v728 = vsub.f32 %v726, %v727
    %v729 = vand.u32 %v728, 4294901760
    %730 = vmatpush.msra.mxu0 %v729
    %v731 = vand.u32 %v636, 4294901760
    %v732 = vsub.f32 %v636, %v731
    %v733 = vand.u32 %v732, 4294901760
    %v734 = vsub.f32 %v732, %v733
    %v735 = vand.u32 %v734, 4294901760
    %736 = vmatpush.msra.mxu0 %v735
    %v737 = vand.u32 %v635, 4294901760
    %v738 = vsub.f32 %v635, %v737
    %v739 = vand.u32 %v738, 4294901760
    %v740 = vsub.f32 %v738, %v739
    %v741 = vand.u32 %v740, 4294901760
    %742 = vmatpush.msra.mxu0 %v741
    %v743 = vand.u32 %v634, 4294901760
    %v744 = vsub.f32 %v634, %v743
    %v745 = vand.u32 %v744, 4294901760
    %v746 = vsub.f32 %v744, %v745
    %v747 = vand.u32 %v746, 4294901760
    %748 = vmatpush.msra.mxu0 %v747
    %v749 = vand.u32 %v633, 4294901760
    %v750 = vsub.f32 %v633, %v749
    %v751 = vand.u32 %v750, 4294901760
    %v752 = vsub.f32 %v750, %v751
    %v753 = vand.u32 %v752, 4294901760
    %754 = vmatpush.msra.mxu0 %v753
    %v755 = vand.u32 %v632, 4294901760
    %v756 = vsub.f32 %v632, %v755
    %v757 = vand.u32 %v756, 4294901760
    %v758 = vsub.f32 %v756, %v757
    %v759 = vand.u32 %v758, 4294901760
    %760 = vmatpush.msra.mxu0 %v759
    %v761 = vand.u32 %v631, 4294901760
    %v762 = vsub.f32 %v631, %v761
    %v763 = vand.u32 %v762, 4294901760
    %v764 = vsub.f32 %v762, %v763
    %v765 = vand.u32 %v764, 4294901760
    %766 = vmatpush.msra.mxu0 %v765
    %v767 = vand.u32 %v630, 4294901760
    %v768 = vsub.f32 %v630, %v767
    %v769 = vand.u32 %v768, 4294901760
    %v770 = vsub.f32 %v768, %v769
    %v771 = vand.u32 %v770, 4294901760
    %772 = vmatpush.msra.mxu0 %v771
    %v773 = vand.u32 %v629, 4294901760
    %v774 = vsub.f32 %v629, %v773
    %v775 = vand.u32 %v774, 4294901760
    %v776 = vsub.f32 %v774, %v775
    %v777 = vand.u32 %v776, 4294901760
    %778 = vmatpush.msra.mxu0 %v777
    %v779 = vand.u32 %v628, 4294901760
    %v780 = vsub.f32 %v628, %v779
    %v781 = vand.u32 %v780, 4294901760
    %v782 = vsub.f32 %v780, %v781
    %v783 = vand.u32 %v782, 4294901760
    %784 = vmatpush.msra.mxu0 %v783
    %v785 = vand.u32 %v627, 4294901760
    %786 = vmatmul.f32.gmra.mxu0 %v785
    %v787 = vpop.f32.mrf.mxu0
    %v788 = vadd.f32 %v687, %v787
    %789 = vdwg.mxu0
    %v790 = vand.u32 %v643, 4294901760
    %v791 = vsub.f32 %v643, %v790
    %792 = vmatpush.msra.mxu0 %v791
    %v793 = vand.u32 %v642, 4294901760
    %v794 = vsub.f32 %v642, %v793
    %795 = vmatpush.msra.mxu0 %v794
    %v796 = vand.u32 %v641, 4294901760
    %v797 = vsub.f32 %v641, %v796
    %798 = vmatpush.msra.mxu0 %v797
    %v799 = vand.u32 %v640, 4294901760
    %v800 = vsub.f32 %v640, %v799
    %801 = vmatpush.msra.mxu0 %v800
    %v802 = vand.u32 %v639, 4294901760
    %v803 = vsub.f32 %v639, %v802
    %804 = vmatpush.msra.mxu0 %v803
    %v805 = vand.u32 %v638, 4294901760
    %v806 = vsub.f32 %v638, %v805
    %807 = vmatpush.msra.mxu0 %v806
    %v808 = vand.u32 %v637, 4294901760
    %v809 = vsub.f32 %v637, %v808
    %810 = vmatpush.msra.mxu0 %v809
    %v811 = vand.u32 %v636, 4294901760
    %v812 = vsub.f32 %v636, %v811
    %813 = vmatpush.msra.mxu0 %v812
    %v814 = vand.u32 %v635, 4294901760
    %v815 = vsub.f32 %v635, %v814
    %816 = vmatpush.msra.mxu0 %v815
    %v817 = vand.u32 %v634, 4294901760
    %v818 = vsub.f32 %v634, %v817
    %819 = vmatpush.msra.mxu0 %v818
    %v820 = vand.u32 %v633, 4294901760
    %v821 = vsub.f32 %v633, %v820
    %822 = vmatpush.msra.mxu0 %v821
    %v823 = vand.u32 %v632, 4294901760
    %v824 = vsub.f32 %v632, %v823
    %825 = vmatpush.msra.mxu0 %v824
    %v826 = vand.u32 %v631, 4294901760
    %v827 = vsub.f32 %v631, %v826
    %828 = vmatpush.msra.mxu0 %v827
    %v829 = vand.u32 %v630, 4294901760
    %v830 = vsub.f32 %v630, %v829
    %831 = vmatpush.msra.mxu0 %v830
    %v832 = vand.u32 %v629, 4294901760
    %v833 = vsub.f32 %v629, %v832
    %834 = vmatpush.msra.mxu0 %v833
    %v835 = vand.u32 %v628, 4294901760
    %v836 = vsub.f32 %v628, %v835
    %837 = vmatpush.msra.mxu0 %v836
    %v838 = vand.u32 %v627, 4294901760
    %v839 = vsub.f32 %v627, %v838
    %840 = vmatmul.f32.gmra.mxu0 %v839
    %v841 = vpop.f32.mrf.mxu0
    %v842 = vadd.f32 %v788, %v841
    %843 = vdwg.mxu0
    %v844 = vand.u32 %v643, 4294901760
    %845 = vmatpush.msra.mxu0 %v844
    %v846 = vand.u32 %v642, 4294901760
    %847 = vmatpush.msra.mxu0 %v846
    %v848 = vand.u32 %v641, 4294901760
    %849 = vmatpush.msra.mxu0 %v848
    %v850 = vand.u32 %v640, 4294901760
    %851 = vmatpush.msra.mxu0 %v850
    %v852 = vand.u32 %v639, 4294901760
    %853 = vmatpush.msra.mxu0 %v852
    %v854 = vand.u32 %v638, 4294901760
    %855 = vmatpush.msra.mxu0 %v854
    %v856 = vand.u32 %v637, 4294901760
    %857 = vmatpush.msra.mxu0 %v856
    %v858 = vand.u32 %v636, 4294901760
    %859 = vmatpush.msra.mxu0 %v858
    %v860 = vand.u32 %v635, 4294901760
    %861 = vmatpush.msra.mxu0 %v860
    %v862 = vand.u32 %v634, 4294901760
    %863 = vmatpush.msra.mxu0 %v862
    %v864 = vand.u32 %v633, 4294901760
    %865 = vmatpush.msra.mxu0 %v864
    %v866 = vand.u32 %v632, 4294901760
    %867 = vmatpush.msra.mxu0 %v866
    %v868 = vand.u32 %v631, 4294901760
    %869 = vmatpush.msra.mxu0 %v868
    %v870 = vand.u32 %v630, 4294901760
    %871 = vmatpush.msra.mxu0 %v870
    %v872 = vand.u32 %v629, 4294901760
    %873 = vmatpush.msra.mxu0 %v872
    %v874 = vand.u32 %v628, 4294901760
    %875 = vmatpush.msra.mxu0 %v874
    %v876 = vand.u32 %v627, 4294901760
    %v877 = vsub.f32 %v627, %v876
    %v878 = vand.u32 %v877, 4294901760
    %879 = vmatmul.f32.gmra.mxu0 %v878
    %v880 = vpop.f32.mrf.mxu0
    %v881 = vadd.f32 %v842, %v880
    %882 = vdwg.mxu0
    %v883 = vand.u32 %v643, 4294901760
    %v884 = vsub.f32 %v643, %v883
    %v885 = vand.u32 %v884, 4294901760
    %886 = vmatpush.msra.mxu0 %v885
    %v887 = vand.u32 %v642, 4294901760
    %v888 = vsub.f32 %v642, %v887
    %v889 = vand.u32 %v888, 4294901760
    %890 = vmatpush.msra.mxu0 %v889
    %v891 = vand.u32 %v641, 4294901760
    %v892 = vsub.f32 %v641, %v891
    %v893 = vand.u32 %v892, 4294901760
    %894 = vmatpush.msra.mxu0 %v893
    %v895 = vand.u32 %v640, 4294901760
    %v896 = vsub.f32 %v640, %v895
    %v897 = vand.u32 %v896, 4294901760
    %898 = vmatpush.msra.mxu0 %v897
    %v899 = vand.u32 %v639, 4294901760
    %v900 = vsub.f32 %v639, %v899
    %v901 = vand.u32 %v900, 4294901760
    %902 = vmatpush.msra.mxu0 %v901
    %v903 = vand.u32 %v638, 4294901760
    %v904 = vsub.f32 %v638, %v903
    %v905 = vand.u32 %v904, 4294901760
    %906 = vmatpush.msra.mxu0 %v905
    %v907 = vand.u32 %v637, 4294901760
    %v908 = vsub.f32 %v637, %v907
    %v909 = vand.u32 %v908, 4294901760
    %910 = vmatpush.msra.mxu0 %v909
    %v911 = vand.u32 %v636, 4294901760
    %v912 = vsub.f32 %v636, %v911
    %v913 = vand.u32 %v912, 4294901760
    %914 = vmatpush.msra.mxu0 %v913
    %v915 = vand.u32 %v635, 4294901760
    %v916 = vsub.f32 %v635, %v915
    %v917 = vand.u32 %v916, 4294901760
    %918 = vmatpush.msra.mxu0 %v917
    %v919 = vand.u32 %v634, 4294901760
    %v920 = vsub.f32 %v634, %v919
    %v921 = vand.u32 %v920, 4294901760
    %922 = vmatpush.msra.mxu0 %v921
    %v923 = vand.u32 %v633, 4294901760
    %v924 = vsub.f32 %v633, %v923
    %v925 = vand.u32 %v924, 4294901760
    %926 = vmatpush.msra.mxu0 %v925
    %v927 = vand.u32 %v632, 4294901760
    %v928 = vsub.f32 %v632, %v927
    %v929 = vand.u32 %v928, 4294901760
    %930 = vmatpush.msra.mxu0 %v929
    %v931 = vand.u32 %v631, 4294901760
    %v932 = vsub.f32 %v631, %v931
    %v933 = vand.u32 %v932, 4294901760
    %934 = vmatpush.msra.mxu0 %v933
    %v935 = vand.u32 %v630, 4294901760
    %v936 = vsub.f32 %v630, %v935
    %v937 = vand.u32 %v936, 4294901760
    %938 = vmatpush.msra.mxu0 %v937
    %v939 = vand.u32 %v629, 4294901760
    %v940 = vsub.f32 %v629, %v939
    %v941 = vand.u32 %v940, 4294901760
    %942 = vmatpush.msra.mxu0 %v941
    %v943 = vand.u32 %v628, 4294901760
    %v944 = vsub.f32 %v628, %v943
    %v945 = vand.u32 %v944, 4294901760
    %946 = vmatpush.msra.mxu0 %v945
    %v947 = vand.u32 %v627, 4294901760
    %948 = vmatmul.f32.gmra.mxu0 %v947
    %v949 = vpop.f32.mrf.mxu0
    %v950 = vadd.f32 %v881, %v949
    %951 = vdwg.mxu0
    %v952 = vand.u32 %v643, 4294901760
    %953 = vmatpush.msra.mxu0 %v952
    %v954 = vand.u32 %v642, 4294901760
    %955 = vmatpush.msra.mxu0 %v954
    %v956 = vand.u32 %v641, 4294901760
    %957 = vmatpush.msra.mxu0 %v956
    %v958 = vand.u32 %v640, 4294901760
    %959 = vmatpush.msra.mxu0 %v958
    %v960 = vand.u32 %v639, 4294901760
    %961 = vmatpush.msra.mxu0 %v960
    %v962 = vand.u32 %v638, 4294901760
    %963 = vmatpush.msra.mxu0 %v962
    %v964 = vand.u32 %v637, 4294901760
    %965 = vmatpush.msra.mxu0 %v964
    %v966 = vand.u32 %v636, 4294901760
    %967 = vmatpush.msra.mxu0 %v966
    %v968 = vand.u32 %v635, 4294901760
    %969 = vmatpush.msra.mxu0 %v968
    %v970 = vand.u32 %v634, 4294901760
    %971 = vmatpush.msra.mxu0 %v970
    %v972 = vand.u32 %v633, 4294901760
    %973 = vmatpush.msra.mxu0 %v972
    %v974 = vand.u32 %v632, 4294901760
    %975 = vmatpush.msra.mxu0 %v974
    %v976 = vand.u32 %v631, 4294901760
    %977 = vmatpush.msra.mxu0 %v976
    %v978 = vand.u32 %v630, 4294901760
    %979 = vmatpush.msra.mxu0 %v978
    %v980 = vand.u32 %v629, 4294901760
    %981 = vmatpush.msra.mxu0 %v980
    %v982 = vand.u32 %v628, 4294901760
    %983 = vmatpush.msra.mxu0 %v982
    %v984 = vand.u32 %v627, 4294901760
    %985 = vmatmul.f32.gmra.mxu0 %v984
    %v986 = vpop.f32.mrf.mxu0
    %v987 = vadd.f32 %v950, %v986
    %988 = vdwg.mxu0
    %v989 = vmax.f32 %v987, 0.0
    %v990 = vld [vmem:[#allocation11] sm:$0xff]
    %v991 = vld [vmem:[#allocation11 + $0x8] sm:$0xff]
    %v992 = vld [vmem:[#allocation11 + $0x10] sm:$0xff]
    %v993 = vld [vmem:[#allocation11 + $0x18] sm:$0xff]
    %v994 = vld [vmem:[#allocation11 + $0x20] sm:$0xff]
    %v995 = vld [vmem:[#allocation11 + $0x28] sm:$0xff]
    %v996 = vld [vmem:[#allocation11 + $0x30] sm:$0xff]
    %v997 = vld [vmem:[#allocation11 + $0x38] sm:$0xff]
    %v998 = vld [vmem:[#allocation11 + $0x40] sm:$0xff]
    %v999 = vld [vmem:[#allocation11 + $0x48] sm:$0xff]
    %v1000 = vld [vmem:[#allocation11 + $0x50] sm:$0xff]
    %v1001 = vld [vmem:[#allocation11 + $0x58] sm:$0xff]
    %v1002 = vld [vmem:[#allocation11 + $0x60] sm:$0xff]
    %v1003 = vld [vmem:[#allocation11 + $0x68] sm:$0xff]
    %v1004 = vld [vmem:[#allocation11 + $0x70] sm:$0xff]
    %v1005 = vld [vmem:[#allocation11 + $0x78] sm:$0xff]
    %v1006 = vld [vmem:[%s8] sm:$0x1]
    %v1008 = vperm.slane %v1006, 0
    %v1010 = vand.u32 %v1005, 4294901760
    %1011 = vmatpush.msra.mxu0 %v1010
    %v1012 = vand.u32 %v1004, 4294901760
    %1013 = vmatpush.msra.mxu0 %v1012
    %v1014 = vand.u32 %v1003, 4294901760
    %1015 = vmatpush.msra.mxu0 %v1014
    %v1016 = vand.u32 %v1002, 4294901760
    %1017 = vmatpush.msra.mxu0 %v1016
    %v1018 = vand.u32 %v1001, 4294901760
    %1019 = vmatpush.msra.mxu0 %v1018
    %v1020 = vand.u32 %v1000, 4294901760
    %1021 = vmatpush.msra.mxu0 %v1020
    %v1022 = vand.u32 %v999, 4294901760
    %1023 = vmatpush.msra.mxu0 %v1022
    %v1024 = vand.u32 %v998, 4294901760
    %1025 = vmatpush.msra.mxu0 %v1024
    %v1026 = vand.u32 %v997, 4294901760
    %1027 = vmatpush.msra.mxu0 %v1026
    %v1028 = vand.u32 %v996, 4294901760
    %1029 = vmatpush.msra.mxu0 %v1028
    %v1030 = vand.u32 %v995, 4294901760
    %1031 = vmatpush.msra.mxu0 %v1030
    %v1032 = vand.u32 %v994, 4294901760
    %1033 = vmatpush.msra.mxu0 %v1032
    %v1034 = vand.u32 %v993, 4294901760
    %1035 = vmatpush.msra.mxu0 %v1034
    %v1036 = vand.u32 %v992, 4294901760
    %1037 = vmatpush.msra.mxu0 %v1036
    %v1038 = vand.u32 %v991, 4294901760
    %1039 = vmatpush.msra.mxu0 %v1038
    %v1040 = vand.u32 %v990, 4294901760
    %1041 = vmatpush.msra.mxu0 %v1040
    %v1042 = vand.u32 %v989, 4294901760
    %v1043 = vsub.f32 %v989, %v1042
    %v1044 = vand.u32 %v1043, 4294901760
    %v1045 = vsub.f32 %v1043, %v1044
    %v1046 = vand.u32 %v1045, 4294901760
    %1047 = vmatmul.f32.gmra.mxu0 %v1046
    %v1048 = vpop.f32.mrf.mxu0
    %v1049 = vadd.f32 %v1008, %v1048
    %1050 = vdwg.mxu0
    %v1051 = vand.u32 %v1005, 4294901760
    %v1052 = vsub.f32 %v1005, %v1051
    %v1053 = vand.u32 %v1052, 4294901760
    %v1054 = vsub.f32 %v1052, %v1053
    %v1055 = vand.u32 %v1054, 4294901760
    %1056 = vmatpush.msra.mxu0 %v1055
    %v1057 = vand.u32 %v1004, 4294901760
    %v1058 = vsub.f32 %v1004, %v1057
    %v1059 = vand.u32 %v1058, 4294901760
    %v1060 = vsub.f32 %v1058, %v1059
    %v1061 = vand.u32 %v1060, 4294901760
    %1062 = vmatpush.msra.mxu0 %v1061
    %v1063 = vand.u32 %v1003, 4294901760
    %v1064 = vsub.f32 %v1003, %v1063
    %v1065 = vand.u32 %v1064, 4294901760
    %v1066 = vsub.f32 %v1064, %v1065
    %v1067 = vand.u32 %v1066, 4294901760
    %1068 = vmatpush.msra.mxu0 %v1067
    %v1069 = vand.u32 %v1002, 4294901760
    %v1070 = vsub.f32 %v1002, %v1069
    %v1071 = vand.u32 %v1070, 4294901760
    %v1072 = vsub.f32 %v1070, %v1071
    %v1073 = vand.u32 %v1072, 4294901760
    %1074 = vmatpush.msra.mxu0 %v1073
    %v1075 = vand.u32 %v1001, 4294901760
    %v1076 = vsub.f32 %v1001, %v1075
    %v1077 = vand.u32 %v1076, 4294901760
    %v1078 = vsub.f32 %v1076, %v1077
    %v1079 = vand.u32 %v1078, 4294901760
    %1080 = vmatpush.msra.mxu0 %v1079
    %v1081 = vand.u32 %v1000, 4294901760
    %v1082 = vsub.f32 %v1000, %v1081
    %v1083 = vand.u32 %v1082, 4294901760
    %v1084 = vsub.f32 %v1082, %v1083
    %v1085 = vand.u32 %v1084, 4294901760
    %1086 = vmatpush.msra.mxu0 %v1085
    %v1087 = vand.u32 %v999, 4294901760
    %v1088 = vsub.f32 %v999, %v1087
    %v1089 = vand.u32 %v1088, 4294901760
    %v1090 = vsub.f32 %v1088, %v1089
    %v1091 = vand.u32 %v1090, 4294901760
    %1092 = vmatpush.msra.mxu0 %v1091
    %v1093 = vand.u32 %v998, 4294901760
    %v1094 = vsub.f32 %v998, %v1093
    %v1095 = vand.u32 %v1094, 4294901760
    %v1096 = vsub.f32 %v1094, %v1095
    %v1097 = vand.u32 %v1096, 4294901760
    %1098 = vmatpush.msra.mxu0 %v1097
    %v1099 = vand.u32 %v997, 4294901760
    %v1100 = vsub.f32 %v997, %v1099
    %v1101 = vand.u32 %v1100, 4294901760
    %v1102 = vsub.f32 %v1100, %v1101
    %v1103 = vand.u32 %v1102, 4294901760
    %1104 = vmatpush.msra.mxu0 %v1103
    %v1105 = vand.u32 %v996, 4294901760
    %v1106 = vsub.f32 %v996, %v1105
    %v1107 = vand.u32 %v1106, 4294901760
    %v1108 = vsub.f32 %v1106, %v1107
    %v1109 = vand.u32 %v1108, 4294901760
    %1110 = vmatpush.msra.mxu0 %v1109
    %v1111 = vand.u32 %v995, 4294901760
    %v1112 = vsub.f32 %v995, %v1111
    %v1113 = vand.u32 %v1112, 4294901760
    %v1114 = vsub.f32 %v1112, %v1113
    %v1115 = vand.u32 %v1114, 4294901760
    %1116 = vmatpush.msra.mxu0 %v1115
    %v1117 = vand.u32 %v994, 4294901760
    %v1118 = vsub.f32 %v994, %v1117
    %v1119 = vand.u32 %v1118, 4294901760
    %v1120 = vsub.f32 %v1118, %v1119
    %v1121 = vand.u32 %v1120, 4294901760
    %1122 = vmatpush.msra.mxu0 %v1121
    %v1123 = vand.u32 %v993, 4294901760
    %v1124 = vsub.f32 %v993, %v1123
    %v1125 = vand.u32 %v1124, 4294901760
    %v1126 = vsub.f32 %v1124, %v1125
    %v1127 = vand.u32 %v1126, 4294901760
    %1128 = vmatpush.msra.mxu0 %v1127
    %v1129 = vand.u32 %v992, 4294901760
    %v1130 = vsub.f32 %v992, %v1129
    %v1131 = vand.u32 %v1130, 4294901760
    %v1132 = vsub.f32 %v1130, %v1131
    %v1133 = vand.u32 %v1132, 4294901760
    %1134 = vmatpush.msra.mxu0 %v1133
    %v1135 = vand.u32 %v991, 4294901760
    %v1136 = vsub.f32 %v991, %v1135
    %v1137 = vand.u32 %v1136, 4294901760
    %v1138 = vsub.f32 %v1136, %v1137
    %v1139 = vand.u32 %v1138, 4294901760
    %1140 = vmatpush.msra.mxu0 %v1139
    %v1141 = vand.u32 %v990, 4294901760
    %v1142 = vsub.f32 %v990, %v1141
    %v1143 = vand.u32 %v1142, 4294901760
    %v1144 = vsub.f32 %v1142, %v1143
    %v1145 = vand.u32 %v1144, 4294901760
    %1146 = vmatpush.msra.mxu0 %v1145
    %v1147 = vand.u32 %v989, 4294901760
    %1148 = vmatmul.f32.gmra.mxu0 %v1147
    %v1149 = vpop.f32.mrf.mxu0
    %v1150 = vadd.f32 %v1049, %v1149
    %1151 = vdwg.mxu0
    %v1152 = vand.u32 %v1005, 4294901760
    %v1153 = vsub.f32 %v1005, %v1152
    %1154 = vmatpush.msra.mxu0 %v1153
    %v1155 = vand.u32 %v1004, 4294901760
    %v1156 = vsub.f32 %v1004, %v1155
    %1157 = vmatpush.msra.mxu0 %v1156
    %v1158 = vand.u32 %v1003, 4294901760
    %v1159 = vsub.f32 %v1003, %v1158
    %1160 = vmatpush.msra.mxu0 %v1159
    %v1161 = vand.u32 %v1002, 4294901760
    %v1162 = vsub.f32 %v1002, %v1161
    %1163 = vmatpush.msra.mxu0 %v1162
    %v1164 = vand.u32 %v1001, 4294901760
    %v1165 = vsub.f32 %v1001, %v1164
    %1166 = vmatpush.msra.mxu0 %v1165
    %v1167 = vand.u32 %v1000, 4294901760
    %v1168 = vsub.f32 %v1000, %v1167
    %1169 = vmatpush.msra.mxu0 %v1168
    %v1170 = vand.u32 %v999, 4294901760
    %v1171 = vsub.f32 %v999, %v1170
    %1172 = vmatpush.msra.mxu0 %v1171
    %v1173 = vand.u32 %v998, 4294901760
    %v1174 = vsub.f32 %v998, %v1173
    %1175 = vmatpush.msra.mxu0 %v1174
    %v1176 = vand.u32 %v997, 4294901760
    %v1177 = vsub.f32 %v997, %v1176
    %1178 = vmatpush.msra.mxu0 %v1177
    %v1179 = vand.u32 %v996, 4294901760
    %v1180 = vsub.f32 %v996, %v1179
    %1181 = vmatpush.msra.mxu0 %v1180
    %v1182 = vand.u32 %v995, 4294901760
    %v1183 = vsub.f32 %v995, %v1182
    %1184 = vmatpush.msra.mxu0 %v1183
    %v1185 = vand.u32 %v994, 4294901760
    %v1186 = vsub.f32 %v994, %v1185
    %1187 = vmatpush.msra.mxu0 %v1186
    %v1188 = vand.u32 %v993, 4294901760
    %v1189 = vsub.f32 %v993, %v1188
    %1190 = vmatpush.msra.mxu0 %v1189
    %v1191 = vand.u32 %v992, 4294901760
    %v1192 = vsub.f32 %v992, %v1191
    %1193 = vmatpush.msra.mxu0 %v1192
    %v1194 = vand.u32 %v991, 4294901760
    %v1195 = vsub.f32 %v991, %v1194
    %1196 = vmatpush.msra.mxu0 %v1195
    %v1197 = vand.u32 %v990, 4294901760
    %v1198 = vsub.f32 %v990, %v1197
    %1199 = vmatpush.msra.mxu0 %v1198
    %v1200 = vand.u32 %v989, 4294901760
    %v1201 = vsub.f32 %v989, %v1200
    %1202 = vmatmul.f32.gmra.mxu0 %v1201
    %v1203 = vpop.f32.mrf.mxu0
    %v1204 = vadd.f32 %v1150, %v1203
    %1205 = vdwg.mxu0
    %v1206 = vand.u32 %v1005, 4294901760
    %1207 = vmatpush.msra.mxu0 %v1206
    %v1208 = vand.u32 %v1004, 4294901760
    %1209 = vmatpush.msra.mxu0 %v1208
    %v1210 = vand.u32 %v1003, 4294901760
    %1211 = vmatpush.msra.mxu0 %v1210
    %v1212 = vand.u32 %v1002, 4294901760
    %1213 = vmatpush.msra.mxu0 %v1212
    %v1214 = vand.u32 %v1001, 4294901760
    %1215 = vmatpush.msra.mxu0 %v1214
    %v1216 = vand.u32 %v1000, 4294901760
    %1217 = vmatpush.msra.mxu0 %v1216
    %v1218 = vand.u32 %v999, 4294901760
    %1219 = vmatpush.msra.mxu0 %v1218
    %v1220 = vand.u32 %v998, 4294901760
    %1221 = vmatpush.msra.mxu0 %v1220
    %v1222 = vand.u32 %v997, 4294901760
    %1223 = vmatpush.msra.mxu0 %v1222
    %v1224 = vand.u32 %v996, 4294901760
    %1225 = vmatpush.msra.mxu0 %v1224
    %v1226 = vand.u32 %v995, 4294901760
    %1227 = vmatpush.msra.mxu0 %v1226
    %v1228 = vand.u32 %v994, 4294901760
    %1229 = vmatpush.msra.mxu0 %v1228
    %v1230 = vand.u32 %v993, 4294901760
    %1231 = vmatpush.msra.mxu0 %v1230
    %v1232 = vand.u32 %v992, 4294901760
    %1233 = vmatpush.msra.mxu0 %v1232
    %v1234 = vand.u32 %v991, 4294901760
    %1235 = vmatpush.msra.mxu0 %v1234
    %v1236 = vand.u32 %v990, 4294901760
    %1237 = vmatpush.msra.mxu0 %v1236
    %v1238 = vand.u32 %v989, 4294901760
    %v1239 = vsub.f32 %v989, %v1238
    %v1240 = vand.u32 %v1239, 4294901760
    %1241 = vmatmul.f32.gmra.mxu0 %v1240
    %v1242 = vpop.f32.mrf.mxu0
    %v1243 = vadd.f32 %v1204, %v1242
    %1244 = vdwg.mxu0
    %v1245 = vand.u32 %v1005, 4294901760
    %v1246 = vsub.f32 %v1005, %v1245
    %v1247 = vand.u32 %v1246, 4294901760
    %1248 = vmatpush.msra.mxu0 %v1247
    %v1249 = vand.u32 %v1004, 4294901760
    %v1250 = vsub.f32 %v1004, %v1249
    %v1251 = vand.u32 %v1250, 4294901760
    %1252 = vmatpush.msra.mxu0 %v1251
    %v1253 = vand.u32 %v1003, 4294901760
    %v1254 = vsub.f32 %v1003, %v1253
    %v1255 = vand.u32 %v1254, 4294901760
    %1256 = vmatpush.msra.mxu0 %v1255
    %v1257 = vand.u32 %v1002, 4294901760
    %v1258 = vsub.f32 %v1002, %v1257
    %v1259 = vand.u32 %v1258, 4294901760
    %1260 = vmatpush.msra.mxu0 %v1259
    %v1261 = vand.u32 %v1001, 4294901760
    %v1262 = vsub.f32 %v1001, %v1261
    %v1263 = vand.u32 %v1262, 4294901760
    %1264 = vmatpush.msra.mxu0 %v1263
    %v1265 = vand.u32 %v1000, 4294901760
    %v1266 = vsub.f32 %v1000, %v1265
    %v1267 = vand.u32 %v1266, 4294901760
    %1268 = vmatpush.msra.mxu0 %v1267
    %v1269 = vand.u32 %v999, 4294901760
    %v1270 = vsub.f32 %v999, %v1269
    %v1271 = vand.u32 %v1270, 4294901760
    %1272 = vmatpush.msra.mxu0 %v1271
    %v1273 = vand.u32 %v998, 4294901760
    %v1274 = vsub.f32 %v998, %v1273
    %v1275 = vand.u32 %v1274, 4294901760
    %1276 = vmatpush.msra.mxu0 %v1275
    %v1277 = vand.u32 %v997, 4294901760
    %v1278 = vsub.f32 %v997, %v1277
    %v1279 = vand.u32 %v1278, 4294901760
    %1280 = vmatpush.msra.mxu0 %v1279
    %v1281 = vand.u32 %v996, 4294901760
    %v1282 = vsub.f32 %v996, %v1281
    %v1283 = vand.u32 %v1282, 4294901760
    %1284 = vmatpush.msra.mxu0 %v1283
    %v1285 = vand.u32 %v995, 4294901760
    %v1286 = vsub.f32 %v995, %v1285
    %v1287 = vand.u32 %v1286, 4294901760
    %1288 = vmatpush.msra.mxu0 %v1287
    %v1289 = vand.u32 %v994, 4294901760
    %v1290 = vsub.f32 %v994, %v1289
    %v1291 = vand.u32 %v1290, 4294901760
    %1292 = vmatpush.msra.mxu0 %v1291
    %v1293 = vand.u32 %v993, 4294901760
    %v1294 = vsub.f32 %v993, %v1293
    %v1295 = vand.u32 %v1294, 4294901760
    %1296 = vmatpush.msra.mxu0 %v1295
    %v1297 = vand.u32 %v992, 4294901760
    %v1298 = vsub.f32 %v992, %v1297
    %v1299 = vand.u32 %v1298, 4294901760
    %1300 = vmatpush.msra.mxu0 %v1299
    %v1301 = vand.u32 %v991, 4294901760
    %v1302 = vsub.f32 %v991, %v1301
    %v1303 = vand.u32 %v1302, 4294901760
    %1304 = vmatpush.msra.mxu0 %v1303
    %v1305 = vand.u32 %v990, 4294901760
    %v1306 = vsub.f32 %v990, %v1305
    %v1307 = vand.u32 %v1306, 4294901760
    %1308 = vmatpush.msra.mxu0 %v1307
    %v1309 = vand.u32 %v989, 4294901760
    %1310 = vmatmul.f32.gmra.mxu0 %v1309
    %v1311 = vpop.f32.mrf.mxu0
    %v1312 = vadd.f32 %v1243, %v1311
    %1313 = vdwg.mxu0
    %v1314 = vand.u32 %v1005, 4294901760
    %1315 = vmatpush.msra.mxu0 %v1314
    %v1316 = vand.u32 %v1004, 4294901760
    %1317 = vmatpush.msra.mxu0 %v1316
    %v1318 = vand.u32 %v1003, 4294901760
    %1319 = vmatpush.msra.mxu0 %v1318
    %v1320 = vand.u32 %v1002, 4294901760
    %1321 = vmatpush.msra.mxu0 %v1320
    %v1322 = vand.u32 %v1001, 4294901760
    %1323 = vmatpush.msra.mxu0 %v1322
    %v1324 = vand.u32 %v1000, 4294901760
    %1325 = vmatpush.msra.mxu0 %v1324
    %v1326 = vand.u32 %v999, 4294901760
    %1327 = vmatpush.msra.mxu0 %v1326
    %v1328 = vand.u32 %v998, 4294901760
    %1329 = vmatpush.msra.mxu0 %v1328
    %v1330 = vand.u32 %v997, 4294901760
    %1331 = vmatpush.msra.mxu0 %v1330
    %v1332 = vand.u32 %v996, 4294901760
    %1333 = vmatpush.msra.mxu0 %v1332
    %v1334 = vand.u32 %v995, 4294901760
    %1335 = vmatpush.msra.mxu0 %v1334
    %v1336 = vand.u32 %v994, 4294901760
    %1337 = vmatpush.msra.mxu0 %v1336
    %v1338 = vand.u32 %v993, 4294901760
    %1339 = vmatpush.msra.mxu0 %v1338
    %v1340 = vand.u32 %v992, 4294901760
    %1341 = vmatpush.msra.mxu0 %v1340
    %v1342 = vand.u32 %v991, 4294901760
    %1343 = vmatpush.msra.mxu0 %v1342
    %v1344 = vand.u32 %v990, 4294901760
    %1345 = vmatpush.msra.mxu0 %v1344
    %v1346 = vand.u32 %v989, 4294901760
    %1347 = vmatmul.f32.gmra.mxu0 %v1346
    %v1348 = vpop.f32.mrf.mxu0
    %v1349 = vadd.f32 %v1312, %v1348
    %1350 = vdwg.mxu0
    %v1351 = vmax.f32 %v1349, 0.0
    %1352 = vst [vmem:[#allocation13] sm:$0xff] %v1351
    // Predicated region
    $region62: #{tpu_custom_call.1} parent=1 // pred_check
      _
    $region63: #{tpu_custom_call.1} parent=1 // pred_check_branch
      %1354 = sbr.rel (0) target = $region65
    $region64: #{tpu_custom_call.1} parent=1 // pred_region
      %1356 = vsyncadd [#allocation4], 0
      %s1358 = sshll.u32 [#allocation13], 4
      %s1359 = int_to_ptr.vmem [resolvable:$true] %s1358
      %s1360 = sshll.u32 %s9, 4
      %s1361 = int_to_ptr.hbm [resolvable:$true] %s1360
      %1363 = dma.vmem_to_hbm [thread:$0]  %s1359, 128, %s1361, [#allocation4]
    $region65: #{tpu_custom_call.1} parent=1 // pred_fallthru
      _
    // Predicated region
    $region66: #{tpu_custom_call.1} parent=1 // pred_check
      _
    $region67: #{tpu_custom_call.1} parent=1 // pred_check_branch
      %1365 = sbr.rel (0) target = $region69
    $region68: #{tpu_custom_call.1} parent=1 // pred_region
      %1367 = dma.done [#allocation4], 128
    $region69: #{tpu_custom_call.1} parent=1 // pred_fallthru
      _
    %1368 = vsyncpa [#allocation3], 1
    %1369 = vsyncpa [#allocation6], 1
    %1370 = vsyncpa [#allocation9], 1
    %1371 = vsyncpa [#allocation12], 1
    %1372 = vsyncpa [#allocation4], 1

// kernel: tpu_custom_call.1
$region0: #{tpu_custom_call.1}
  #allocation0 [shape = 'u32[]', space=smem, size = 0x4, offset = 0x4, fixed_abs, tag = 'smem constant byte address 0x4 - core index']
  #allocation1 [shape = 'u32[72,128]{1,0:T(1,128)}', space=vmem, size = 0x9000, scoped, tag = 'internal scratch']
  %s0 = inlined_call_operand.hbm [shape: f32[8,64], index: 0, kind: input, shape index: {}]
  %s1 = inlined_call_operand.hbm [shape: f32[8,64], index: 1, kind: input, shape index: {}]
  %s2 = inlined_call_operand.hbm [shape: f32[64,128], index: 2, kind: input, shape index: {}]
  %s3 = inlined_call_operand.hbm [shape: f32[64,128], index: 3, kind: input, shape index: {}]
  %s4 = inlined_call_operand.vmem [shape: f32[1,128], index: 4, kind: input, shape index: {}]
  %s5 = inlined_call_operand.hbm [shape: f32[128,128], index: 5, kind: input, shape index: {}]
  %s6 = inlined_call_operand.vmem [shape: f32[1,128], index: 6, kind: input, shape index: {}]
  %s7 = inlined_call_operand.hbm [shape: f32[128,128], index: 7, kind: input, shape index: {}]
  %s8 = inlined_call_operand.vmem [shape: f32[1,128], index: 8, kind: input, shape index: {}]
  %s9 = inlined_call_operand.hbm [shape: f32[8,128], index: 9, kind: output, shape index: {}]
  %s10 = sld [smem:[#allocation0]]
  $region70: #{tpu_custom_call.1} parent=0
    _
  %s12 = ssub.s32 1, %s10
  %s13 = scalar_select 0, %s12, %s10
  $region1: #{tpu_custom_call.1} parent=0
    #allocation2 [shape = 'u8[4096]{0}', space=vmem, size = 0x1000, scoped, tag = 'input window, operand 0, single buffered']
    #allocation3 [shape = 's32[1]{0}', space=sflag, size = 0x4, scoped, tag = 'scoped memory for tpu_custom_call.1']
    #allocation4 [shape = 's32[1]{0}', space=sflag, size = 0x4, scoped, tag = 'scoped memory for tpu_custom_call.1']
    #allocation5 [shape = 'u8[4096]{0}', space=vmem, size = 0x1000, scoped, tag = 'input window, operand 1, single buffered']
    #allocation6 [shape = 's32[1]{0}', space=sflag, size = 0x4, scoped, tag = 'scoped memory for tpu_custom_call.1']
    #allocation7 [shape = 'u8[32768]{0}', space=vmem, size = 0x8000, scoped, tag = 'input window, operand 2, single buffered']
    #allocation8 [shape = 'u8[32768]{0}', space=vmem, size = 0x8000, scoped, tag = 'input window, operand 3, single buffered']
    #allocation9 [shape = 's32[1]{0}', space=sflag, size = 0x4, scoped, tag = 'scoped memory for tpu_custom_call.1']
    #allocation10 [shape = 'u8[65536]{0}', space=vmem, size = 0x10000, scoped, tag = 'input window, operand 5, single buffered']
    #allocation11 [shape = 'u8[65536]{0}', space=vmem, size = 0x10000, scoped, tag = 'input window, operand 7, single buffered']
    #allocation12 [shape = 's32[1]{0}', space=sflag, size = 0x4, scoped, tag = 'scoped memory for tpu_custom_call.1']
    #allocation13 [shape = 'u8[4096]{0}', space=vmem, size = 0x1000, scoped, tag = 'output window, operand 0, single buffered']
    %14 = vsyncpa [#allocation3], 0
    %15 = vsyncpa [#allocation6], 0
    %16 = vsyncpa [#allocation9], 0
    %17 = vsyncpa [#allocation12], 0
    %18 = vsyncpa [#allocation4], 0
    // Predicated region
    $region2: #{tpu_custom_call.1} parent=1 // pred_check
      _
    $region3: #{tpu_custom_call.1} parent=1 // pred_check_branch
      %20 = sbr.rel (0) target = $region5
    $region4: #{tpu_custom_call.1} parent=1 // pred_region
      %22 = vsyncadd [#allocation3], 0
      %s24 = sshll.u32 %s0, 4
      %s25 = int_to_ptr.hbm [resolvable:$true] %s24
      %s26 = sshll.u32 [#allocation2], 4
      %s27 = int_to_ptr.vmem [resolvable:$true] %s26
      %29 = dma.hbm_to_vmem [thread:$0]  %s25, 128, %s27, [#allocation3]
    $region5: #{tpu_custom_call.1} parent=1 // pred_fallthru
      _
    // Predicated region
    $region6: #{tpu_custom_call.1} parent=1 // pred_check
      _
    $region7: #{tpu_custom_call.1} parent=1 // pred_check_branch
      %31 = sbr.rel (0) target = $region9
    $region8: #{tpu_custom_call.1} parent=1 // pred_region
      %33 = vsyncadd [#allocation6], 0
      %s35 = sshll.u32 %s1, 4
      %s36 = int_to_ptr.hbm [resolvable:$true] %s35
      %s37 = sshll.u32 [#allocation5], 4
      %s38 = int_to_ptr.vmem [resolvable:$true] %s37
      %40 = dma.hbm_to_vmem [thread:$0]  %s36, 128, %s38, [#allocation6]
    $region9: #{tpu_custom_call.1} parent=1 // pred_fallthru
      _
    // Predicated region
    $region10: #{tpu_custom_call.1} parent=1 // pred_check
      _
    $region11: #{tpu_custom_call.1} parent=1 // pred_check_branch
      %42 = sbr.rel (0) target = $region13
    $region12: #{tpu_custom_call.1} parent=1 // pred_region
      %44 = vsyncadd [#allocation6], 0
      %s45 = sshll.u32 %s2, 4
      %s46 = int_to_ptr.hbm [resolvable:$true] %s45
      %s47 = sshll.u32 [#allocation7], 4
      %s48 = int_to_ptr.vmem [resolvable:$true] %s47
      %53 = dma.hbm_to_vmem [thread:$0]  %s46, 1024, %s48, [#allocation6], 128, 128, 8
    $region13: #{tpu_custom_call.1} parent=1 // pred_fallthru
      _
    // Predicated region
    $region14: #{tpu_custom_call.1} parent=1 // pred_check
      _
    $region15: #{tpu_custom_call.1} parent=1 // pred_check_branch
      %55 = sbr.rel (0) target = $region17
    $region16: #{tpu_custom_call.1} parent=1 // pred_region
      %57 = vsyncadd [#allocation9], 0
      %s58 = sshll.u32 %s3, 4
      %s59 = int_to_ptr.hbm [resolvable:$true] %s58
      %s60 = sshll.u32 [#allocation8], 4
      %s61 = int_to_ptr.vmem [resolvable:$true] %s60
      %66 = dma.hbm_to_vmem [thread:$0]  %s59, 1024, %s61, [#allocation9], 128, 128, 8
    $region17: #{tpu_custom_call.1} parent=1 // pred_fallthru
      _
    // Predicated region
    $region18: #{tpu_custom_call.1} parent=1 // pred_check
      _
    $region19: #{tpu_custom_call.1} parent=1 // pred_check_branch
      %68 = sbr.rel (0) target = $region21
    $region20: #{tpu_custom_call.1} parent=1 // pred_region
      _
    $region21: #{tpu_custom_call.1} parent=1 // pred_fallthru
      _
    // Predicated region
    $region22: #{tpu_custom_call.1} parent=1 // pred_check
      _
    $region23: #{tpu_custom_call.1} parent=1 // pred_check_branch
      %70 = sbr.rel (0) target = $region25
    $region24: #{tpu_custom_call.1} parent=1 // pred_region
      %72 = vsyncadd [#allocation9], 0
      %s73 = sshll.u32 %s5, 4
      %s74 = int_to_ptr.hbm [resolvable:$true] %s73
      %s75 = sshll.u32 [#allocation10], 4
      %s76 = int_to_ptr.vmem [resolvable:$true] %s75
      %81 = dma.hbm_to_vmem [thread:$0]  %s74, 2048, %s76, [#allocation9], 128, 128, 8
    $region25: #{tpu_custom_call.1} parent=1 // pred_fallthru
      _
    // Predicated region
    $region26: #{tpu_custom_call.1} parent=1 // pred_check
      _
    $region27: #{tpu_custom_call.1} parent=1 // pred_check_branch
      %83 = sbr.rel (0) target = $region29
    $region28: #{tpu_custom_call.1} parent=1 // pred_region
      _
    $region29: #{tpu_custom_call.1} parent=1 // pred_fallthru
      _
    // Predicated region
    $region30: #{tpu_custom_call.1} parent=1 // pred_check
      _
    $region31: #{tpu_custom_call.1} parent=1 // pred_check_branch
      %85 = sbr.rel (0) target = $region33
    $region32: #{tpu_custom_call.1} parent=1 // pred_region
      %87 = vsyncadd [#allocation12], 0
      %s88 = sshll.u32 %s7, 4
      %s89 = int_to_ptr.hbm [resolvable:$true] %s88
      %s90 = sshll.u32 [#allocation11], 4
      %s91 = int_to_ptr.vmem [resolvable:$true] %s90
      %96 = dma.hbm_to_vmem [thread:$0]  %s89, 2048, %s91, [#allocation12], 128, 128, 8
    $region33: #{tpu_custom_call.1} parent=1 // pred_fallthru
      _
    // Predicated region
    $region34: #{tpu_custom_call.1} parent=1 // pred_check
      _
    $region35: #{tpu_custom_call.1} parent=1 // pred_check_branch
      %98 = sbr.rel (0) target = $region37
    $region36: #{tpu_custom_call.1} parent=1 // pred_region
      _
    $region37: #{tpu_custom_call.1} parent=1 // pred_fallthru
      _
    // Predicated region
    $region38: #{tpu_custom_call.1} parent=1 // pred_check
      _
    $region39: #{tpu_custom_call.1} parent=1 // pred_check_branch
      %100 = sbr.rel (0) target = $region41
    $region40: #{tpu_custom_call.1} parent=1 // pred_region
      %102 = dma.done [#allocation3], 128
    $region41: #{tpu_custom_call.1} parent=1 // pred_fallthru
      _
    // Predicated region
    $region42: #{tpu_custom_call.1} parent=1 // pred_check
      _
    $region43: #{tpu_custom_call.1} parent=1 // pred_check_branch
      %104 = sbr.rel (0) target = $region45
    $region44: #{tpu_custom_call.1} parent=1 // pred_region
      %106 = dma.done [#allocation6], 128
    $region45: #{tpu_custom_call.1} parent=1 // pred_fallthru
      _
    // Predicated region
    $region46: #{tpu_custom_call.1} parent=1 // pred_check
      _
    $region47: #{tpu_custom_call.1} parent=1 // pred_check_branch
      %108 = sbr.rel (0) target = $region49
    $region48: #{tpu_custom_call.1} parent=1 // pred_region
      %110 = dma.done [#allocation6], 1024
    $region49: #{tpu_custom_call.1} parent=1 // pred_fallthru
      _
    // Predicated region
    $region50: #{tpu_custom_call.1} parent=1 // pred_check
      _
    $region51: #{tpu_custom_call.1} parent=1 // pred_check_branch
      %112 = sbr.rel (0) target = $region53
    $region52: #{tpu_custom_call.1} parent=1 // pred_region
      %114 = dma.done [#allocation9], 1024
    $region53: #{tpu_custom_call.1} parent=1 // pred_fallthru
      _
    // Predicated region
    $region54: #{tpu_custom_call.1} parent=1 // pred_check
      _
    $region55: #{tpu_custom_call.1} parent=1 // pred_check_branch
      %116 = sbr.rel (0) target = $region57
    $region56: #{tpu_custom_call.1} parent=1 // pred_region
      %118 = dma.done [#allocation9], 2048
    $region57: #{tpu_custom_call.1} parent=1 // pred_fallthru
      _
    // Predicated region
    $region58: #{tpu_custom_call.1} parent=1 // pred_check
      _
    $region59: #{tpu_custom_call.1} parent=1 // pred_check_branch
      %120 = sbr.rel (0) target = $region61
    $region60: #{tpu_custom_call.1} parent=1 // pred_region
      %122 = dma.done [#allocation12], 2048
    $region61: #{tpu_custom_call.1} parent=1 // pred_fallthru
      _
    %v123 = vld [vmem:[#allocation2] sm:$0xff]
    %v124 = vld [vmem:[#allocation5] sm:$0xff]
    %v125 = vld [vmem:[#allocation7] sm:$0xff]
    %v126 = vld [vmem:[#allocation7 + $0x8] sm:$0xff]
    %v127 = vld [vmem:[#allocation7 + $0x10] sm:$0xff]
    %v128 = vld [vmem:[#allocation7 + $0x18] sm:$0xff]
    %v129 = vld [vmem:[#allocation7 + $0x20] sm:$0xff]
    %v130 = vld [vmem:[#allocation7 + $0x28] sm:$0xff]
    %v131 = vld [vmem:[#allocation7 + $0x30] sm:$0xff]
    %v132 = vld [vmem:[#allocation7 + $0x38] sm:$0xff]
    %v133 = vld [vmem:[#allocation8] sm:$0xff]
    %v134 = vld [vmem:[#allocation8 + $0x8] sm:$0xff]
    %v135 = vld [vmem:[#allocation8 + $0x10] sm:$0xff]
    %v136 = vld [vmem:[#allocation8 + $0x18] sm:$0xff]
    %v137 = vld [vmem:[#allocation8 + $0x20] sm:$0xff]
    %v138 = vld [vmem:[#allocation8 + $0x28] sm:$0xff]
    %v139 = vld [vmem:[#allocation8 + $0x30] sm:$0xff]
    %v140 = vld [vmem:[#allocation8 + $0x38] sm:$0xff]
    %vm141 = vcmask 523264
    %v143 = vsel %vm141, %v124, 0
    %145 = vmatpush.msra.mxu0 0.0
    %146 = vmatpush.msra.mxu0 0.0
    %147 = vmatpush.msra.mxu0 0.0
    %148 = vmatpush.msra.mxu0 0.0
    %149 = vmatpush.msra.mxu0 0.0
    %150 = vmatpush.msra.mxu0 0.0
    %151 = vmatpush.msra.mxu0 0.0
    %152 = vmatpush.msra.mxu0 0.0
    %v153 = vand.u32 %v140, 4294901760
    %154 = vmatpush.msra.mxu0 %v153
    %v155 = vand.u32 %v139, 4294901760
    %156 = vmatpush.msra.mxu0 %v155
    %v157 = vand.u32 %v138, 4294901760
    %158 = vmatpush.msra.mxu0 %v157
    %v159 = vand.u32 %v137, 4294901760
    %160 = vmatpush.msra.mxu0 %v159
    %v161 = vand.u32 %v136, 4294901760
    %162 = vmatpush.msra.mxu0 %v161
    %v163 = vand.u32 %v135, 4294901760
    %164 = vmatpush.msra.mxu0 %v163
    %v165 = vand.u32 %v134, 4294901760
    %166 = vmatpush.msra.mxu0 %v165
    %v167 = vand.u32 %v133, 4294901760
    %168 = vmatpush.msra.mxu0 %v167
    %v169 = vand.u32 %v143, 4294901760
    %v170 = vsub.f32 %v143, %v169
    %v171 = vand.u32 %v170, 4294901760
    %v172 = vsub.f32 %v170, %v171
    %v173 = vand.u32 %v172, 4294901760
    %174 = vmatmul.f32.gmra.mxu0 %v173
    %v175 = vpop.f32.mrf.mxu0
    %v176 = vadd.f32 0.0, %v175
    %177 = vdwg.mxu0
    %178 = vmatpush.msra.mxu0 0.0
    %179 = vmatpush.msra.mxu0 0.0
    %180 = vmatpush.msra.mxu0 0.0
    %181 = vmatpush.msra.mxu0 0.0
    %182 = vmatpush.msra.mxu0 0.0
    %183 = vmatpush.msra.mxu0 0.0
    %184 = vmatpush.msra.mxu0 0.0
    %185 = vmatpush.msra.mxu0 0.0
    %v186 = vand.u32 %v140, 4294901760
    %v187 = vsub.f32 %v140, %v186
    %v188 = vand.u32 %v187, 4294901760
    %v189 = vsub.f32 %v187, %v188
    %v190 = vand.u32 %v189, 4294901760
    %191 = vmatpush.msra.mxu0 %v190
    %v192 = vand.u32 %v139, 4294901760
    %v193 = vsub.f32 %v139, %v192
    %v194 = vand.u32 %v193, 4294901760
    %v195 = vsub.f32 %v193, %v194
    %v196 = vand.u32 %v195, 4294901760
    %197 = vmatpush.msra.mxu0 %v196
    %v198 = vand.u32 %v138, 4294901760
    %v199 = vsub.f32 %v138, %v198
    %v200 = vand.u32 %v199, 4294901760
    %v201 = vsub.f32 %v199, %v200
    %v202 = vand.u32 %v201, 4294901760
    %203 = vmatpush.msra.mxu0 %v202
    %v204 = vand.u32 %v137, 4294901760
    %v205 = vsub.f32 %v137, %v204
    %v206 = vand.u32 %v205, 4294901760
    %v207 = vsub.f32 %v205, %v206
    %v208 = vand.u32 %v207, 4294901760
    %209 = vmatpush.msra.mxu0 %v208
    %v210 = vand.u32 %v136, 4294901760
    %v211 = vsub.f32 %v136, %v210
    %v212 = vand.u32 %v211, 4294901760
    %v213 = vsub.f32 %v211, %v212
    %v214 = vand.u32 %v213, 4294901760
    %215 = vmatpush.msra.mxu0 %v214
    %v216 = vand.u32 %v135, 4294901760
    %v217 = vsub.f32 %v135, %v216
    %v218 = vand.u32 %v217, 4294901760
    %v219 = vsub.f32 %v217, %v218
    %v220 = vand.u32 %v219, 4294901760
    %221 = vmatpush.msra.mxu0 %v220
    %v222 = vand.u32 %v134, 4294901760
    %v223 = vsub.f32 %v134, %v222
    %v224 = vand.u32 %v223, 4294901760
    %v225 = vsub.f32 %v223, %v224
    %v226 = vand.u32 %v225, 4294901760
    %227 = vmatpush.msra.mxu0 %v226
    %v228 = vand.u32 %v133, 4294901760
    %v229 = vsub.f32 %v133, %v228
    %v230 = vand.u32 %v229, 4294901760
    %v231 = vsub.f32 %v229, %v230
    %v232 = vand.u32 %v231, 4294901760
    %233 = vmatpush.msra.mxu0 %v232
    %v234 = vand.u32 %v143, 4294901760
    %235 = vmatmul.f32.gmra.mxu0 %v234
    %v236 = vpop.f32.mrf.mxu0
    %v237 = vadd.f32 %v176, %v236
    %238 = vdwg.mxu0
    %239 = vmatpush.msra.mxu0 0.0
    %240 = vmatpush.msra.mxu0 0.0
    %241 = vmatpush.msra.mxu0 0.0
    %242 = vmatpush.msra.mxu0 0.0
    %243 = vmatpush.msra.mxu0 0.0
    %244 = vmatpush.msra.mxu0 0.0
    %245 = vmatpush.msra.mxu0 0.0
    %246 = vmatpush.msra.mxu0 0.0
    %v247 = vand.u32 %v140, 4294901760
    %v248 = vsub.f32 %v140, %v247
    %249 = vmatpush.msra.mxu0 %v248
    %v250 = vand.u32 %v139, 4294901760
    %v251 = vsub.f32 %v139, %v250
    %252 = vmatpush.msra.mxu0 %v251
    %v253 = vand.u32 %v138, 4294901760
    %v254 = vsub.f32 %v138, %v253
    %255 = vmatpush.msra.mxu0 %v254
    %v256 = vand.u32 %v137, 4294901760
    %v257 = vsub.f32 %v137, %v256
    %258 = vmatpush.msra.mxu0 %v257
    %v259 = vand.u32 %v136, 4294901760
    %v260 = vsub.f32 %v136, %v259
    %261 = vmatpush.msra.mxu0 %v260
    %v262 = vand.u32 %v135, 4294901760
    %v263 = vsub.f32 %v135, %v262
    %264 = vmatpush.msra.mxu0 %v263
    %v265 = vand.u32 %v134, 4294901760
    %v266 = vsub.f32 %v134, %v265
    %267 = vmatpush.msra.mxu0 %v266
    %v268 = vand.u32 %v133, 4294901760
    %v269 = vsub.f32 %v133, %v268
    %270 = vmatpush.msra.mxu0 %v269
    %v271 = vand.u32 %v143, 4294901760
    %v272 = vsub.f32 %v143, %v271
    %273 = vmatmul.f32.gmra.mxu0 %v272
    %v274 = vpop.f32.mrf.mxu0
    %v275 = vadd.f32 %v237, %v274
    %276 = vdwg.mxu0
    %277 = vmatpush.msra.mxu0 0.0
    %278 = vmatpush.msra.mxu0 0.0
    %279 = vmatpush.msra.mxu0 0.0
    %280 = vmatpush.msra.mxu0 0.0
    %281 = vmatpush.msra.mxu0 0.0
    %282 = vmatpush.msra.mxu0 0.0
    %283 = vmatpush.msra.mxu0 0.0
    %284 = vmatpush.msra.mxu0 0.0
    %v285 = vand.u32 %v140, 4294901760
    %286 = vmatpush.msra.mxu0 %v285
    %v287 = vand.u32 %v139, 4294901760
    %288 = vmatpush.msra.mxu0 %v287
    %v289 = vand.u32 %v138, 4294901760
    %290 = vmatpush.msra.mxu0 %v289
    %v291 = vand.u32 %v137, 4294901760
    %292 = vmatpush.msra.mxu0 %v291
    %v293 = vand.u32 %v136, 4294901760
    %294 = vmatpush.msra.mxu0 %v293
    %v295 = vand.u32 %v135, 4294901760
    %296 = vmatpush.msra.mxu0 %v295
    %v297 = vand.u32 %v134, 4294901760
    %298 = vmatpush.msra.mxu0 %v297
    %v299 = vand.u32 %v133, 4294901760
    %300 = vmatpush.msra.mxu0 %v299
    %v301 = vand.u32 %v143, 4294901760
    %v302 = vsub.f32 %v143, %v301
    %v303 = vand.u32 %v302, 4294901760
    %304 = vmatmul.f32.gmra.mxu0 %v303
    %v305 = vpop.f32.mrf.mxu0
    %v306 = vadd.f32 %v275, %v305
    %307 = vdwg.mxu0
    %308 = vmatpush.msra.mxu0 0.0
    %309 = vmatpush.msra.mxu0 0.0
    %310 = vmatpush.msra.mxu0 0.0
    %311 = vmatpush.msra.mxu0 0.0
    %312 = vmatpush.msra.mxu0 0.0
    %313 = vmatpush.msra.mxu0 0.0
    %314 = vmatpush.msra.mxu0 0.0
    %315 = vmatpush.msra.mxu0 0.0
    %v316 = vand.u32 %v140, 4294901760
    %v317 = vsub.f32 %v140, %v316
    %v318 = vand.u32 %v317, 4294901760
    %319 = vmatpush.msra.mxu0 %v318
    %v320 = vand.u32 %v139, 4294901760
    %v321 = vsub.f32 %v139, %v320
    %v322 = vand.u32 %v321, 4294901760
    %323 = vmatpush.msra.mxu0 %v322
    %v324 = vand.u32 %v138, 4294901760
    %v325 = vsub.f32 %v138, %v324
    %v326 = vand.u32 %v325, 4294901760
    %327 = vmatpush.msra.mxu0 %v326
    %v328 = vand.u32 %v137, 4294901760
    %v329 = vsub.f32 %v137, %v328
    %v330 = vand.u32 %v329, 4294901760
    %331 = vmatpush.msra.mxu0 %v330
    %v332 = vand.u32 %v136, 4294901760
    %v333 = vsub.f32 %v136, %v332
    %v334 = vand.u32 %v333, 4294901760
    %335 = vmatpush.msra.mxu0 %v334
    %v336 = vand.u32 %v135, 4294901760
    %v337 = vsub.f32 %v135, %v336
    %v338 = vand.u32 %v337, 4294901760
    %339 = vmatpush.msra.mxu0 %v338
    %v340 = vand.u32 %v134, 4294901760
    %v341 = vsub.f32 %v134, %v340
    %v342 = vand.u32 %v341, 4294901760
    %343 = vmatpush.msra.mxu0 %v342
    %v344 = vand.u32 %v133, 4294901760
    %v345 = vsub.f32 %v133, %v344
    %v346 = vand.u32 %v345, 4294901760
    %347 = vmatpush.msra.mxu0 %v346
    %v348 = vand.u32 %v143, 4294901760
    %349 = vmatmul.f32.gmra.mxu0 %v348
    %v350 = vpop.f32.mrf.mxu0
    %v351 = vadd.f32 %v306, %v350
    %352 = vdwg.mxu0
    %353 = vmatpush.msra.mxu0 0.0
    %354 = vmatpush.msra.mxu0 0.0
    %355 = vmatpush.msra.mxu0 0.0
    %356 = vmatpush.msra.mxu0 0.0
    %357 = vmatpush.msra.mxu0 0.0
    %358 = vmatpush.msra.mxu0 0.0
    %359 = vmatpush.msra.mxu0 0.0
    %360 = vmatpush.msra.mxu0 0.0
    %v361 = vand.u32 %v140, 4294901760
    %362 = vmatpush.msra.mxu0 %v361
    %v363 = vand.u32 %v139, 4294901760
    %364 = vmatpush.msra.mxu0 %v363
    %v365 = vand.u32 %v138, 4294901760
    %366 = vmatpush.msra.mxu0 %v365
    %v367 = vand.u32 %v137, 4294901760
    %368 = vmatpush.msra.mxu0 %v367
    %v369 = vand.u32 %v136, 4294901760
    %370 = vmatpush.msra.mxu0 %v369
    %v371 = vand.u32 %v135, 4294901760
    %372 = vmatpush.msra.mxu0 %v371
    %v373 = vand.u32 %v134, 4294901760
    %374 = vmatpush.msra.mxu0 %v373
    %v375 = vand.u32 %v133, 4294901760
    %376 = vmatpush.msra.mxu0 %v375
    %v377 = vand.u32 %v143, 4294901760
    %378 = vmatmul.f32.gmra.mxu0 %v377
    %v379 = vpop.f32.mrf.mxu0
    %v380 = vadd.f32 %v351, %v379
    %381 = vdwg.mxu0
    %v383 = vsel %vm141, %v123, 0
    %385 = vmatpush.msra.mxu0 0.0
    %386 = vmatpush.msra.mxu0 0.0
    %387 = vmatpush.msra.mxu0 0.0
    %388 = vmatpush.msra.mxu0 0.0
    %389 = vmatpush.msra.mxu0 0.0
    %390 = vmatpush.msra.mxu0 0.0
    %391 = vmatpush.msra.mxu0 0.0
    %392 = vmatpush.msra.mxu0 0.0
    %v393 = vand.u32 %v132, 4294901760
    %394 = vmatpush.msra.mxu0 %v393
    %v395 = vand.u32 %v131, 4294901760
    %396 = vmatpush.msra.mxu0 %v395
    %v397 = vand.u32 %v130, 4294901760
    %398 = vmatpush.msra.mxu0 %v397
    %v399 = vand.u32 %v129, 4294901760
    %400 = vmatpush.msra.mxu0 %v399
    %v401 = vand.u32 %v128, 4294901760
    %402 = vmatpush.msra.mxu0 %v401
    %v403 = vand.u32 %v127, 4294901760
    %404 = vmatpush.msra.mxu0 %v403
    %v405 = vand.u32 %v126, 4294901760
    %406 = vmatpush.msra.mxu0 %v405
    %v407 = vand.u32 %v125, 4294901760
    %408 = vmatpush.msra.mxu0 %v407
    %v409 = vand.u32 %v383, 4294901760
    %v410 = vsub.f32 %v383, %v409
    %v411 = vand.u32 %v410, 4294901760
    %v412 = vsub.f32 %v410, %v411
    %v413 = vand.u32 %v412, 4294901760
    %414 = vmatmul.f32.gmra.mxu0 %v413
    %v415 = vpop.f32.mrf.mxu0
    %v416 = vadd.f32 %v380, %v415
    %417 = vdwg.mxu0
    %418 = vmatpush.msra.mxu0 0.0
    %419 = vmatpush.msra.mxu0 0.0
    %420 = vmatpush.msra.mxu0 0.0
    %421 = vmatpush.msra.mxu0 0.0
    %422 = vmatpush.msra.mxu0 0.0
    %423 = vmatpush.msra.mxu0 0.0
    %424 = vmatpush.msra.mxu0 0.0
    %425 = vmatpush.msra.mxu0 0.0
    %v426 = vand.u32 %v132, 4294901760
    %v427 = vsub.f32 %v132, %v426
    %v428 = vand.u32 %v427, 4294901760
    %v429 = vsub.f32 %v427, %v428
    %v430 = vand.u32 %v429, 4294901760
    %431 = vmatpush.msra.mxu0 %v430
    %v432 = vand.u32 %v131, 4294901760
    %v433 = vsub.f32 %v131, %v432
    %v434 = vand.u32 %v433, 4294901760
    %v435 = vsub.f32 %v433, %v434
    %v436 = vand.u32 %v435, 4294901760
    %437 = vmatpush.msra.mxu0 %v436
    %v438 = vand.u32 %v130, 4294901760
    %v439 = vsub.f32 %v130, %v438
    %v440 = vand.u32 %v439, 4294901760
    %v441 = vsub.f32 %v439, %v440
    %v442 = vand.u32 %v441, 4294901760
    %443 = vmatpush.msra.mxu0 %v442
    %v444 = vand.u32 %v129, 4294901760
    %v445 = vsub.f32 %v129, %v444
    %v446 = vand.u32 %v445, 4294901760
    %v447 = vsub.f32 %v445, %v446
    %v448 = vand.u32 %v447, 4294901760
    %449 = vmatpush.msra.mxu0 %v448
    %v450 = vand.u32 %v128, 4294901760
    %v451 = vsub.f32 %v128, %v450
    %v452 = vand.u32 %v451, 4294901760
    %v453 = vsub.f32 %v451, %v452
    %v454 = vand.u32 %v453, 4294901760
    %455 = vmatpush.msra.mxu0 %v454
    %v456 = vand.u32 %v127, 4294901760
    %v457 = vsub.f32 %v127, %v456
    %v458 = vand.u32 %v457, 4294901760
    %v459 = vsub.f32 %v457, %v458
    %v460 = vand.u32 %v459, 4294901760
    %461 = vmatpush.msra.mxu0 %v460
    %v462 = vand.u32 %v126, 4294901760
    %v463 = vsub.f32 %v126, %v462
    %v464 = vand.u32 %v463, 4294901760
    %v465 = vsub.f32 %v463, %v464
    %v466 = vand.u32 %v465, 4294901760
    %467 = vmatpush.msra.mxu0 %v466
    %v468 = vand.u32 %v125, 4294901760
    %v469 = vsub.f32 %v125, %v468
    %v470 = vand.u32 %v469, 4294901760
    %v471 = vsub.f32 %v469, %v470
    %v472 = vand.u32 %v471, 4294901760
    %473 = vmatpush.msra.mxu0 %v472
    %v474 = vand.u32 %v383, 4294901760
    %475 = vmatmul.f32.gmra.mxu0 %v474
    %v476 = vpop.f32.mrf.mxu0
    %v477 = vadd.f32 %v416, %v476
    %478 = vdwg.mxu0
    %479 = vmatpush.msra.mxu0 0.0
    %480 = vmatpush.msra.mxu0 0.0
    %481 = vmatpush.msra.mxu0 0.0
    %482 = vmatpush.msra.mxu0 0.0
    %483 = vmatpush.msra.mxu0 0.0
    %484 = vmatpush.msra.mxu0 0.0
    %485 = vmatpush.msra.mxu0 0.0
    %486 = vmatpush.msra.mxu0 0.0
    %v487 = vand.u32 %v132, 4294901760
    %v488 = vsub.f32 %v132, %v487
    %489 = vmatpush.msra.mxu0 %v488
    %v490 = vand.u32 %v131, 4294901760
    %v491 = vsub.f32 %v131, %v490
    %492 = vmatpush.msra.mxu0 %v491
    %v493 = vand.u32 %v130, 4294901760
    %v494 = vsub.f32 %v130, %v493
    %495 = vmatpush.msra.mxu0 %v494
    %v496 = vand.u32 %v129, 4294901760
    %v497 = vsub.f32 %v129, %v496
    %498 = vmatpush.msra.mxu0 %v497
    %v499 = vand.u32 %v128, 4294901760
    %v500 = vsub.f32 %v128, %v499
    %501 = vmatpush.msra.mxu0 %v500
    %v502 = vand.u32 %v127, 4294901760
    %v503 = vsub.f32 %v127, %v502
    %504 = vmatpush.msra.mxu0 %v503
    %v505 = vand.u32 %v126, 4294901760
    %v506 = vsub.f32 %v126, %v505
    %507 = vmatpush.msra.mxu0 %v506
    %v508 = vand.u32 %v125, 4294901760
    %v509 = vsub.f32 %v125, %v508
    %510 = vmatpush.msra.mxu0 %v509
    %v511 = vand.u32 %v383, 4294901760
    %v512 = vsub.f32 %v383, %v511
    %513 = vmatmul.f32.gmra.mxu0 %v512
    %v514 = vpop.f32.mrf.mxu0
    %v515 = vadd.f32 %v477, %v514
    %516 = vdwg.mxu0
    %517 = vmatpush.msra.mxu0 0.0
    %518 = vmatpush.msra.mxu0 0.0
    %519 = vmatpush.msra.mxu0 0.0
    %520 = vmatpush.msra.mxu0 0.0
    %521 = vmatpush.msra.mxu0 0.0
    %522 = vmatpush.msra.mxu0 0.0
    %523 = vmatpush.msra.mxu0 0.0
    %524 = vmatpush.msra.mxu0 0.0
    %v525 = vand.u32 %v132, 4294901760
    %526 = vmatpush.msra.mxu0 %v525
    %v527 = vand.u32 %v131, 4294901760
    %528 = vmatpush.msra.mxu0 %v527
    %v529 = vand.u32 %v130, 4294901760
    %530 = vmatpush.msra.mxu0 %v529
    %v531 = vand.u32 %v129, 4294901760
    %532 = vmatpush.msra.mxu0 %v531
    %v533 = vand.u32 %v128, 4294901760
    %534 = vmatpush.msra.mxu0 %v533
    %v535 = vand.u32 %v127, 4294901760
    %536 = vmatpush.msra.mxu0 %v535
    %v537 = vand.u32 %v126, 4294901760
    %538 = vmatpush.msra.mxu0 %v537
    %v539 = vand.u32 %v125, 4294901760
    %540 = vmatpush.msra.mxu0 %v539
    %v541 = vand.u32 %v383, 4294901760
    %v542 = vsub.f32 %v383, %v541
    %v543 = vand.u32 %v542, 4294901760
    %544 = vmatmul.f32.gmra.mxu0 %v543
    %v545 = vpop.f32.mrf.mxu0
    %v546 = vadd.f32 %v515, %v545
    %547 = vdwg.mxu0
    %548 = vmatpush.msra.mxu0 0.0
    %549 = vmatpush.msra.mxu0 0.0
    %550 = vmatpush.msra.mxu0 0.0
    %551 = vmatpush.msra.mxu0 0.0
    %552 = vmatpush.msra.mxu0 0.0
    %553 = vmatpush.msra.mxu0 0.0
    %554 = vmatpush.msra.mxu0 0.0
    %555 = vmatpush.msra.mxu0 0.0
    %v556 = vand.u32 %v132, 4294901760
    %v557 = vsub.f32 %v132, %v556
    %v558 = vand.u32 %v557, 4294901760
    %559 = vmatpush.msra.mxu0 %v558
    %v560 = vand.u32 %v131, 4294901760
    %v561 = vsub.f32 %v131, %v560
    %v562 = vand.u32 %v561, 4294901760
    %563 = vmatpush.msra.mxu0 %v562
    %v564 = vand.u32 %v130, 4294901760
    %v565 = vsub.f32 %v130, %v564
    %v566 = vand.u32 %v565, 4294901760
    %567 = vmatpush.msra.mxu0 %v566
    %v568 = vand.u32 %v129, 4294901760
    %v569 = vsub.f32 %v129, %v568
    %v570 = vand.u32 %v569, 4294901760
    %571 = vmatpush.msra.mxu0 %v570
    %v572 = vand.u32 %v128, 4294901760
    %v573 = vsub.f32 %v128, %v572
    %v574 = vand.u32 %v573, 4294901760
    %575 = vmatpush.msra.mxu0 %v574
    %v576 = vand.u32 %v127, 4294901760
    %v577 = vsub.f32 %v127, %v576
    %v578 = vand.u32 %v577, 4294901760
    %579 = vmatpush.msra.mxu0 %v578
    %v580 = vand.u32 %v126, 4294901760
    %v581 = vsub.f32 %v126, %v580
    %v582 = vand.u32 %v581, 4294901760
    %583 = vmatpush.msra.mxu0 %v582
    %v584 = vand.u32 %v125, 4294901760
    %v585 = vsub.f32 %v125, %v584
    %v586 = vand.u32 %v585, 4294901760
    %587 = vmatpush.msra.mxu0 %v586
    %v588 = vand.u32 %v383, 4294901760
    %589 = vmatmul.f32.gmra.mxu0 %v588
    %v590 = vpop.f32.mrf.mxu0
    %v591 = vadd.f32 %v546, %v590
    %592 = vdwg.mxu0
    %593 = vmatpush.msra.mxu0 0.0
    %594 = vmatpush.msra.mxu0 0.0
    %595 = vmatpush.msra.mxu0 0.0
    %596 = vmatpush.msra.mxu0 0.0
    %597 = vmatpush.msra.mxu0 0.0
    %598 = vmatpush.msra.mxu0 0.0
    %599 = vmatpush.msra.mxu0 0.0
    %600 = vmatpush.msra.mxu0 0.0
    %v601 = vand.u32 %v132, 4294901760
    %602 = vmatpush.msra.mxu0 %v601
    %v603 = vand.u32 %v131, 4294901760
    %604 = vmatpush.msra.mxu0 %v603
    %v605 = vand.u32 %v130, 4294901760
    %606 = vmatpush.msra.mxu0 %v605
    %v607 = vand.u32 %v129, 4294901760
    %608 = vmatpush.msra.mxu0 %v607
    %v609 = vand.u32 %v128, 4294901760
    %610 = vmatpush.msra.mxu0 %v609
    %v611 = vand.u32 %v127, 4294901760
    %612 = vmatpush.msra.mxu0 %v611
    %v613 = vand.u32 %v126, 4294901760
    %614 = vmatpush.msra.mxu0 %v613
    %v615 = vand.u32 %v125, 4294901760
    %616 = vmatpush.msra.mxu0 %v615
    %v617 = vand.u32 %v383, 4294901760
    %618 = vmatmul.f32.gmra.mxu0 %v617
    %v619 = vpop.f32.mrf.mxu0
    %v620 = vadd.f32 %v591, %v619
    %621 = vdwg.mxu0
    %v622 = vld [vmem:[%s4] sm:$0x1]
    %v624 = vperm.slane %v622, 0
    %v626 = vadd.f32 %v620, %v624
    %v627 = vmax.f32 %v626, 0.0
    %v628 = vld [vmem:[#allocation10] sm:$0xff]
    %v629 = vld [vmem:[#allocation10 + $0x8] sm:$0xff]
    %v630 = vld [vmem:[#allocation10 + $0x10] sm:$0xff]
    %v631 = vld [vmem:[#allocation10 + $0x18] sm:$0xff]
    %v632 = vld [vmem:[#allocation10 + $0x20] sm:$0xff]
    %v633 = vld [vmem:[#allocation10 + $0x28] sm:$0xff]
    %v634 = vld [vmem:[#allocation10 + $0x30] sm:$0xff]
    %v635 = vld [vmem:[#allocation10 + $0x38] sm:$0xff]
    %v636 = vld [vmem:[#allocation10 + $0x40] sm:$0xff]
    %v637 = vld [vmem:[#allocation10 + $0x48] sm:$0xff]
    %v638 = vld [vmem:[#allocation10 + $0x50] sm:$0xff]
    %v639 = vld [vmem:[#allocation10 + $0x58] sm:$0xff]
    %v640 = vld [vmem:[#allocation10 + $0x60] sm:$0xff]
    %v641 = vld [vmem:[#allocation10 + $0x68] sm:$0xff]
    %v642 = vld [vmem:[#allocation10 + $0x70] sm:$0xff]
    %v643 = vld [vmem:[#allocation10 + $0x78] sm:$0xff]
    %v644 = vld [vmem:[%s6] sm:$0x1]
    %v646 = vperm.slane %v644, 0
    %v648 = vand.u32 %v643, 4294901760
    %649 = vmatpush.msra.mxu0 %v648
    %v650 = vand.u32 %v642, 4294901760
    %651 = vmatpush.msra.mxu0 %v650
    %v652 = vand.u32 %v641, 4294901760
    %653 = vmatpush.msra.mxu0 %v652
    %v654 = vand.u32 %v640, 4294901760
    %655 = vmatpush.msra.mxu0 %v654
    %v656 = vand.u32 %v639, 4294901760
    %657 = vmatpush.msra.mxu0 %v656
    %v658 = vand.u32 %v638, 4294901760
    %659 = vmatpush.msra.mxu0 %v658
    %v660 = vand.u32 %v637, 4294901760
    %661 = vmatpush.msra.mxu0 %v660
    %v662 = vand.u32 %v636, 4294901760
    %663 = vmatpush.msra.mxu0 %v662
    %v664 = vand.u32 %v635, 4294901760
    %665 = vmatpush.msra.mxu0 %v664
    %v666 = vand.u32 %v634, 4294901760
    %667 = vmatpush.msra.mxu0 %v666
    %v668 = vand.u32 %v633, 4294901760
    %669 = vmatpush.msra.mxu0 %v668
    %v670 = vand.u32 %v632, 4294901760
    %671 = vmatpush.msra.mxu0 %v670
    %v672 = vand.u32 %v631, 4294901760
    %673 = vmatpush.msra.mxu0 %v672
    %v674 = vand.u32 %v630, 4294901760
    %675 = vmatpush.msra.mxu0 %v674
    %v676 = vand.u32 %v629, 4294901760
    %677 = vmatpush.msra.mxu0 %v676
    %v678 = vand.u32 %v628, 4294901760
    %679 = vmatpush.msra.mxu0 %v678
    %v680 = vand.u32 %v627, 4294901760
    %v681 = vsub.f32 %v627, %v680
    %v682 = vand.u32 %v681, 4294901760
    %v683 = vsub.f32 %v681, %v682
    %v684 = vand.u32 %v683, 4294901760
    %685 = vmatmul.f32.gmra.mxu0 %v684
    %v686 = vpop.f32.mrf.mxu0
    %v687 = vadd.f32 %v646, %v686
    %688 = vdwg.mxu0
    %v689 = vand.u32 %v643, 4294901760
    %v690 = vsub.f32 %v643, %v689
    %v691 = vand.u32 %v690, 4294901760
    %v692 = vsub.f32 %v690, %v691
    %v693 = vand.u32 %v692, 4294901760
    %694 = vmatpush.msra.mxu0 %v693
    %v695 = vand.u32 %v642, 4294901760
    %v696 = vsub.f32 %v642, %v695
    %v697 = vand.u32 %v696, 4294901760
    %v698 = vsub.f32 %v696, %v697
    %v699 = vand.u32 %v698, 4294901760
    %700 = vmatpush.msra.mxu0 %v699
    %v701 = vand.u32 %v641, 4294901760
    %v702 = vsub.f32 %v641, %v701
    %v703 = vand.u32 %v702, 4294901760
    %v704 = vsub.f32 %v702, %v703
    %v705 = vand.u32 %v704, 4294901760
    %706 = vmatpush.msra.mxu0 %v705
    %v707 = vand.u32 %v640, 4294901760
    %v708 = vsub.f32 %v640, %v707
    %v709 = vand.u32 %v708, 4294901760
    %v710 = vsub.f32 %v708, %v709
    %v711 = vand.u32 %v710, 4294901760
    %712 = vmatpush.msra.mxu0 %v711
    %v713 = vand.u32 %v639, 4294901760
    %v714 = vsub.f32 %v639, %v713
    %v715 = vand.u32 %v714, 4294901760
    %v716 = vsub.f32 %v714, %v715
    %v717 = vand.u32 %v716, 4294901760
    %718 = vmatpush.msra.mxu0 %v717
    %v719 = vand.u32 %v638, 4294901760
    %v720 = vsub.f32 %v638, %v719
    %v721 = vand.u32 %v720, 4294901760
    %v722 = vsub.f32 %v720, %v721
    %v723 = vand.u32 %v722, 4294901760
    %724 = vmatpush.msra.mxu0 %v723
    %v725 = vand.u32 %v637, 4294901760
    %v726 = vsub.f32 %v637, %v725
    %v727 = vand.u32 %v726, 4294901760
    %v728 = vsub.f32 %v726, %v727
    %v729 = vand.u32 %v728, 4294901760
    %730 = vmatpush.msra.mxu0 %v729
    %v731 = vand.u32 %v636, 4294901760
    %v732 = vsub.f32 %v636, %v731
    %v733 = vand.u32 %v732, 4294901760
    %v734 = vsub.f32 %v732, %v733
    %v735 = vand.u32 %v734, 4294901760
    %736 = vmatpush.msra.mxu0 %v735
    %v737 = vand.u32 %v635, 4294901760
    %v738 = vsub.f32 %v635, %v737
    %v739 = vand.u32 %v738, 4294901760
    %v740 = vsub.f32 %v738, %v739
    %v741 = vand.u32 %v740, 4294901760
    %742 = vmatpush.msra.mxu0 %v741
    %v743 = vand.u32 %v634, 4294901760
    %v744 = vsub.f32 %v634, %v743
    %v745 = vand.u32 %v744, 4294901760
    %v746 = vsub.f32 %v744, %v745
    %v747 = vand.u32 %v746, 4294901760
    %748 = vmatpush.msra.mxu0 %v747
    %v749 = vand.u32 %v633, 4294901760
    %v750 = vsub.f32 %v633, %v749
    %v751 = vand.u32 %v750, 4294901760
    %v752 = vsub.f32 %v750, %v751
    %v753 = vand.u32 %v752, 4294901760
    %754 = vmatpush.msra.mxu0 %v753
    %v755 = vand.u32 %v632, 4294901760
    %v756 = vsub.f32 %v632, %v755
    %v757 = vand.u32 %v756, 4294901760
    %v758 = vsub.f32 %v756, %v757
    %v759 = vand.u32 %v758, 4294901760
    %760 = vmatpush.msra.mxu0 %v759
    %v761 = vand.u32 %v631, 4294901760
    %v762 = vsub.f32 %v631, %v761
    %v763 = vand.u32 %v762, 4294901760
    %v764 = vsub.f32 %v762, %v763
    %v765 = vand.u32 %v764, 4294901760
    %766 = vmatpush.msra.mxu0 %v765
    %v767 = vand.u32 %v630, 4294901760
    %v768 = vsub.f32 %v630, %v767
    %v769 = vand.u32 %v768, 4294901760
    %v770 = vsub.f32 %v768, %v769
    %v771 = vand.u32 %v770, 4294901760
    %772 = vmatpush.msra.mxu0 %v771
    %v773 = vand.u32 %v629, 4294901760
    %v774 = vsub.f32 %v629, %v773
    %v775 = vand.u32 %v774, 4294901760
    %v776 = vsub.f32 %v774, %v775
    %v777 = vand.u32 %v776, 4294901760
    %778 = vmatpush.msra.mxu0 %v777
    %v779 = vand.u32 %v628, 4294901760
    %v780 = vsub.f32 %v628, %v779
    %v781 = vand.u32 %v780, 4294901760
    %v782 = vsub.f32 %v780, %v781
    %v783 = vand.u32 %v782, 4294901760
    %784 = vmatpush.msra.mxu0 %v783
    %v785 = vand.u32 %v627, 4294901760
    %786 = vmatmul.f32.gmra.mxu0 %v785
    %v787 = vpop.f32.mrf.mxu0
    %v788 = vadd.f32 %v687, %v787
    %789 = vdwg.mxu0
    %v790 = vand.u32 %v643, 4294901760
    %v791 = vsub.f32 %v643, %v790
    %792 = vmatpush.msra.mxu0 %v791
    %v793 = vand.u32 %v642, 4294901760
    %v794 = vsub.f32 %v642, %v793
    %795 = vmatpush.msra.mxu0 %v794
    %v796 = vand.u32 %v641, 4294901760
    %v797 = vsub.f32 %v641, %v796
    %798 = vmatpush.msra.mxu0 %v797
    %v799 = vand.u32 %v640, 4294901760
    %v800 = vsub.f32 %v640, %v799
    %801 = vmatpush.msra.mxu0 %v800
    %v802 = vand.u32 %v639, 4294901760
    %v803 = vsub.f32 %v639, %v802
    %804 = vmatpush.msra.mxu0 %v803
    %v805 = vand.u32 %v638, 4294901760
    %v806 = vsub.f32 %v638, %v805
    %807 = vmatpush.msra.mxu0 %v806
    %v808 = vand.u32 %v637, 4294901760
    %v809 = vsub.f32 %v637, %v808
    %810 = vmatpush.msra.mxu0 %v809
    %v811 = vand.u32 %v636, 4294901760
    %v812 = vsub.f32 %v636, %v811
    %813 = vmatpush.msra.mxu0 %v812
    %v814 = vand.u32 %v635, 4294901760
    %v815 = vsub.f32 %v635, %v814
    %816 = vmatpush.msra.mxu0 %v815
    %v817 = vand.u32 %v634, 4294901760
    %v818 = vsub.f32 %v634, %v817
    %819 = vmatpush.msra.mxu0 %v818
    %v820 = vand.u32 %v633, 4294901760
    %v821 = vsub.f32 %v633, %v820
    %822 = vmatpush.msra.mxu0 %v821
    %v823 = vand.u32 %v632, 4294901760
    %v824 = vsub.f32 %v632, %v823
    %825 = vmatpush.msra.mxu0 %v824
    %v826 = vand.u32 %v631, 4294901760
    %v827 = vsub.f32 %v631, %v826
    %828 = vmatpush.msra.mxu0 %v827
    %v829 = vand.u32 %v630, 4294901760
    %v830 = vsub.f32 %v630, %v829
    %831 = vmatpush.msra.mxu0 %v830
    %v832 = vand.u32 %v629, 4294901760
    %v833 = vsub.f32 %v629, %v832
    %834 = vmatpush.msra.mxu0 %v833
    %v835 = vand.u32 %v628, 4294901760
    %v836 = vsub.f32 %v628, %v835
    %837 = vmatpush.msra.mxu0 %v836
    %v838 = vand.u32 %v627, 4294901760
    %v839 = vsub.f32 %v627, %v838
    %840 = vmatmul.f32.gmra.mxu0 %v839
    %v841 = vpop.f32.mrf.mxu0
    %v842 = vadd.f32 %v788, %v841
    %843 = vdwg.mxu0
    %v844 = vand.u32 %v643, 4294901760
    %845 = vmatpush.msra.mxu0 %v844
    %v846 = vand.u32 %v642, 4294901760
    %847 = vmatpush.msra.mxu0 %v846
    %v848 = vand.u32 %v641, 4294901760
    %849 = vmatpush.msra.mxu0 %v848
    %v850 = vand.u32 %v640, 4294901760
    %851 = vmatpush.msra.mxu0 %v850
    %v852 = vand.u32 %v639, 4294901760
    %853 = vmatpush.msra.mxu0 %v852
    %v854 = vand.u32 %v638, 4294901760
    %855 = vmatpush.msra.mxu0 %v854
    %v856 = vand.u32 %v637, 4294901760
    %857 = vmatpush.msra.mxu0 %v856
    %v858 = vand.u32 %v636, 4294901760
    %859 = vmatpush.msra.mxu0 %v858
    %v860 = vand.u32 %v635, 4294901760
    %861 = vmatpush.msra.mxu0 %v860
    %v862 = vand.u32 %v634, 4294901760
    %863 = vmatpush.msra.mxu0 %v862
    %v864 = vand.u32 %v633, 4294901760
    %865 = vmatpush.msra.mxu0 %v864
    %v866 = vand.u32 %v632, 4294901760
    %867 = vmatpush.msra.mxu0 %v866
    %v868 = vand.u32 %v631, 4294901760
    %869 = vmatpush.msra.mxu0 %v868
    %v870 = vand.u32 %v630, 4294901760
    %871 = vmatpush.msra.mxu0 %v870
    %v872 = vand.u32 %v629, 4294901760
    %873 = vmatpush.msra.mxu0 %v872
    %v874 = vand.u32 %v628, 4294901760
    %875 = vmatpush.msra.mxu0 %v874
    %v876 = vand.u32 %v627, 4294901760
    %v877 = vsub.f32 %v627, %v876
    %v878 = vand.u32 %v877, 4294901760
    %879 = vmatmul.f32.gmra.mxu0 %v878
    %v880 = vpop.f32.mrf.mxu0
    %v881 = vadd.f32 %v842, %v880
    %882 = vdwg.mxu0
    %v883 = vand.u32 %v643, 4294901760
    %v884 = vsub.f32 %v643, %v883
    %v885 = vand.u32 %v884, 4294901760
    %886 = vmatpush.msra.mxu0 %v885
    %v887 = vand.u32 %v642, 4294901760
    %v888 = vsub.f32 %v642, %v887
    %v889 = vand.u32 %v888, 4294901760
    %890 = vmatpush.msra.mxu0 %v889
    %v891 = vand.u32 %v641, 4294901760
    %v892 = vsub.f32 %v641, %v891
    %v893 = vand.u32 %v892, 4294901760
    %894 = vmatpush.msra.mxu0 %v893
    %v895 = vand.u32 %v640, 4294901760
    %v896 = vsub.f32 %v640, %v895
    %v897 = vand.u32 %v896, 4294901760
    %898 = vmatpush.msra.mxu0 %v897
    %v899 = vand.u32 %v639, 4294901760
    %v900 = vsub.f32 %v639, %v899
    %v901 = vand.u32 %v900, 4294901760
    %902 = vmatpush.msra.mxu0 %v901
    %v903 = vand.u32 %v638, 4294901760
    %v904 = vsub.f32 %v638, %v903
    %v905 = vand.u32 %v904, 4294901760
    %906 = vmatpush.msra.mxu0 %v905
    %v907 = vand.u32 %v637, 4294901760
    %v908 = vsub.f32 %v637, %v907
    %v909 = vand.u32 %v908, 4294901760
    %910 = vmatpush.msra.mxu0 %v909
    %v911 = vand.u32 %v636, 4294901760
    %v912 = vsub.f32 %v636, %v911
    %v913 = vand.u32 %v912, 4294901760
    %914 = vmatpush.msra.mxu0 %v913
    %v915 = vand.u32 %v635, 4294901760
    %v916 = vsub.f32 %v635, %v915
    %v917 = vand.u32 %v916, 4294901760
    %918 = vmatpush.msra.mxu0 %v917
    %v919 = vand.u32 %v634, 4294901760
    %v920 = vsub.f32 %v634, %v919
    %v921 = vand.u32 %v920, 4294901760
    %922 = vmatpush.msra.mxu0 %v921
    %v923 = vand.u32 %v633, 4294901760
    %v924 = vsub.f32 %v633, %v923
    %v925 = vand.u32 %v924, 4294901760
    %926 = vmatpush.msra.mxu0 %v925
    %v927 = vand.u32 %v632, 4294901760
    %v928 = vsub.f32 %v632, %v927
    %v929 = vand.u32 %v928, 4294901760
    %930 = vmatpush.msra.mxu0 %v929
    %v931 = vand.u32 %v631, 4294901760
    %v932 = vsub.f32 %v631, %v931
    %v933 = vand.u32 %v932, 4294901760
    %934 = vmatpush.msra.mxu0 %v933
    %v935 = vand.u32 %v630, 4294901760
    %v936 = vsub.f32 %v630, %v935
    %v937 = vand.u32 %v936, 4294901760
    %938 = vmatpush.msra.mxu0 %v937
    %v939 = vand.u32 %v629, 4294901760
    %v940 = vsub.f32 %v629, %v939
    %v941 = vand.u32 %v940, 4294901760
    %942 = vmatpush.msra.mxu0 %v941
    %v943 = vand.u32 %v628, 4294901760
    %v944 = vsub.f32 %v628, %v943
    %v945 = vand.u32 %v944, 4294901760
    %946 = vmatpush.msra.mxu0 %v945
    %v947 = vand.u32 %v627, 4294901760
    %948 = vmatmul.f32.gmra.mxu0 %v947
    %v949 = vpop.f32.mrf.mxu0
    %v950 = vadd.f32 %v881, %v949
    %951 = vdwg.mxu0
    %v952 = vand.u32 %v643, 4294901760
    %953 = vmatpush.msra.mxu0 %v952
    %v954 = vand.u32 %v642, 4294901760
    %955 = vmatpush.msra.mxu0 %v954
    %v956 = vand.u32 %v641, 4294901760
    %957 = vmatpush.msra.mxu0 %v956
    %v958 = vand.u32 %v640, 4294901760
    %959 = vmatpush.msra.mxu0 %v958
    %v960 = vand.u32 %v639, 4294901760
    %961 = vmatpush.msra.mxu0 %v960
    %v962 = vand.u32 %v638, 4294901760
    %963 = vmatpush.msra.mxu0 %v962
    %v964 = vand.u32 %v637, 4294901760
    %965 = vmatpush.msra.mxu0 %v964
    %v966 = vand.u32 %v636, 4294901760
    %967 = vmatpush.msra.mxu0 %v966
    %v968 = vand.u32 %v635, 4294901760
    %969 = vmatpush.msra.mxu0 %v968
    %v970 = vand.u32 %v634, 4294901760
    %971 = vmatpush.msra.mxu0 %v970
    %v972 = vand.u32 %v633, 4294901760
    %973 = vmatpush.msra.mxu0 %v972
    %v974 = vand.u32 %v632, 4294901760
    %975 = vmatpush.msra.mxu0 %v974
    %v976 = vand.u32 %v631, 4294901760
    %977 = vmatpush.msra.mxu0 %v976
    %v978 = vand.u32 %v630, 4294901760
    %979 = vmatpush.msra.mxu0 %v978
    %v980 = vand.u32 %v629, 4294901760
    %981 = vmatpush.msra.mxu0 %v980
    %v982 = vand.u32 %v628, 4294901760
    %983 = vmatpush.msra.mxu0 %v982
    %v984 = vand.u32 %v627, 4294901760
    %985 = vmatmul.f32.gmra.mxu0 %v984
    %v986 = vpop.f32.mrf.mxu0
    %v987 = vadd.f32 %v950, %v986
    %988 = vdwg.mxu0
    %v989 = vmax.f32 %v987, 0.0
    %v990 = vld [vmem:[#allocation11] sm:$0xff]
    %v991 = vld [vmem:[#allocation11 + $0x8] sm:$0xff]
    %v992 = vld [vmem:[#allocation11 + $0x10] sm:$0xff]
    %v993 = vld [vmem:[#allocation11 + $0x18] sm:$0xff]
    %v994 = vld [vmem:[#allocation11 + $0x20] sm:$0xff]
    %v995 = vld [vmem:[#allocation11 + $0x28] sm:$0xff]
    %v996 = vld [vmem:[#allocation11 + $0x30] sm:$0xff]
    %v997 = vld [vmem:[#allocation11 + $0x38] sm:$0xff]
    %v998 = vld [vmem:[#allocation11 + $0x40] sm:$0xff]
    %v999 = vld [vmem:[#allocation11 + $0x48] sm:$0xff]
    %v1000 = vld [vmem:[#allocation11 + $0x50] sm:$0xff]
    %v1001 = vld [vmem:[#allocation11 + $0x58] sm:$0xff]
    %v1002 = vld [vmem:[#allocation11 + $0x60] sm:$0xff]
    %v1003 = vld [vmem:[#allocation11 + $0x68] sm:$0xff]
    %v1004 = vld [vmem:[#allocation11 + $0x70] sm:$0xff]
    %v1005 = vld [vmem:[#allocation11 + $0x78] sm:$0xff]
    %v1006 = vld [vmem:[%s8] sm:$0x1]
    %v1008 = vperm.slane %v1006, 0
    %v1010 = vand.u32 %v1005, 4294901760
    %1011 = vmatpush.msra.mxu0 %v1010
    %v1012 = vand.u32 %v1004, 4294901760
    %1013 = vmatpush.msra.mxu0 %v1012
    %v1014 = vand.u32 %v1003, 4294901760
    %1015 = vmatpush.msra.mxu0 %v1014
    %v1016 = vand.u32 %v1002, 4294901760
    %1017 = vmatpush.msra.mxu0 %v1016
    %v1018 = vand.u32 %v1001, 4294901760
    %1019 = vmatpush.msra.mxu0 %v1018
    %v1020 = vand.u32 %v1000, 4294901760
    %1021 = vmatpush.msra.mxu0 %v1020
    %v1022 = vand.u32 %v999, 4294901760
    %1023 = vmatpush.msra.mxu0 %v1022
    %v1024 = vand.u32 %v998, 4294901760
    %1025 = vmatpush.msra.mxu0 %v1024
    %v1026 = vand.u32 %v997, 4294901760
    %1027 = vmatpush.msra.mxu0 %v1026
    %v1028 = vand.u32 %v996, 4294901760
    %1029 = vmatpush.msra.mxu0 %v1028
    %v1030 = vand.u32 %v995, 4294901760
    %1031 = vmatpush.msra.mxu0 %v1030
    %v1032 = vand.u32 %v994, 4294901760
    %1033 = vmatpush.msra.mxu0 %v1032
    %v1034 = vand.u32 %v993, 4294901760
    %1035 = vmatpush.msra.mxu0 %v1034
    %v1036 = vand.u32 %v992, 4294901760
    %1037 = vmatpush.msra.mxu0 %v1036
    %v1038 = vand.u32 %v991, 4294901760
    %1039 = vmatpush.msra.mxu0 %v1038
    %v1040 = vand.u32 %v990, 4294901760
    %1041 = vmatpush.msra.mxu0 %v1040
    %v1042 = vand.u32 %v989, 4294901760
    %v1043 = vsub.f32 %v989, %v1042
    %v1044 = vand.u32 %v1043, 4294901760
    %v1045 = vsub.f32 %v1043, %v1044
    %v1046 = vand.u32 %v1045, 4294901760
    %1047 = vmatmul.f32.gmra.mxu0 %v1046
    %v1048 = vpop.f32.mrf.mxu0
    %v1049 = vadd.f32 %v1008, %v1048
    %1050 = vdwg.mxu0
    %v1051 = vand.u32 %v1005, 4294901760
    %v1052 = vsub.f32 %v1005, %v1051
    %v1053 = vand.u32 %v1052, 4294901760
    %v1054 = vsub.f32 %v1052, %v1053
    %v1055 = vand.u32 %v1054, 4294901760
    %1056 = vmatpush.msra.mxu0 %v1055
    %v1057 = vand.u32 %v1004, 4294901760
    %v1058 = vsub.f32 %v1004, %v1057
    %v1059 = vand.u32 %v1058, 4294901760
    %v1060 = vsub.f32 %v1058, %v1059
    %v1061 = vand.u32 %v1060, 4294901760
    %1062 = vmatpush.msra.mxu0 %v1061
    %v1063 = vand.u32 %v1003, 4294901760
    %v1064 = vsub.f32 %v1003, %v1063
    %v1065 = vand.u32 %v1064, 4294901760
    %v1066 = vsub.f32 %v1064, %v1065
    %v1067 = vand.u32 %v1066, 4294901760
    %1068 = vmatpush.msra.mxu0 %v1067
    %v1069 = vand.u32 %v1002, 4294901760
    %v1070 = vsub.f32 %v1002, %v1069
    %v1071 = vand.u32 %v1070, 4294901760
    %v1072 = vsub.f32 %v1070, %v1071
    %v1073 = vand.u32 %v1072, 4294901760
    %1074 = vmatpush.msra.mxu0 %v1073
    %v1075 = vand.u32 %v1001, 4294901760
    %v1076 = vsub.f32 %v1001, %v1075
    %v1077 = vand.u32 %v1076, 4294901760
    %v1078 = vsub.f32 %v1076, %v1077
    %v1079 = vand.u32 %v1078, 4294901760
    %1080 = vmatpush.msra.mxu0 %v1079
    %v1081 = vand.u32 %v1000, 4294901760
    %v1082 = vsub.f32 %v1000, %v1081
    %v1083 = vand.u32 %v1082, 4294901760
    %v1084 = vsub.f32 %v1082, %v1083
    %v1085 = vand.u32 %v1084, 4294901760
    %1086 = vmatpush.msra.mxu0 %v1085
    %v1087 = vand.u32 %v999, 4294901760
    %v1088 = vsub.f32 %v999, %v1087
    %v1089 = vand.u32 %v1088, 4294901760
    %v1090 = vsub.f32 %v1088, %v1089
    %v1091 = vand.u32 %v1090, 4294901760
    %1092 = vmatpush.msra.mxu0 %v1091
    %v1093 = vand.u32 %v998, 4294901760
    %v1094 = vsub.f32 %v998, %v1093
    %v1095 = vand.u32 %v1094, 4294901760
    %v1096 = vsub.f32 %v1094, %v1095
    %v1097 = vand.u32 %v1096, 4294901760
    %1098 = vmatpush.msra.mxu0 %v1097
    %v1099 = vand.u32 %v997, 4294901760
    %v1100 = vsub.f32 %v997, %v1099
    %v1101 = vand.u32 %v1100, 4294901760
    %v1102 = vsub.f32 %v1100, %v1101
    %v1103 = vand.u32 %v1102, 4294901760
    %1104 = vmatpush.msra.mxu0 %v1103
    %v1105 = vand.u32 %v996, 4294901760
    %v1106 = vsub.f32 %v996, %v1105
    %v1107 = vand.u32 %v1106, 4294901760
    %v1108 = vsub.f32 %v1106, %v1107
    %v1109 = vand.u32 %v1108, 4294901760
    %1110 = vmatpush.msra.mxu0 %v1109
    %v1111 = vand.u32 %v995, 4294901760
    %v1112 = vsub.f32 %v995, %v1111
    %v1113 = vand.u32 %v1112, 4294901760
    %v1114 = vsub.f32 %v1112, %v1113
    %v1115 = vand.u32 %v1114, 4294901760
    %1116 = vmatpush.msra.mxu0 %v1115
    %v1117 = vand.u32 %v994, 4294901760
    %v1118 = vsub.f32 %v994, %v1117
    %v1119 = vand.u32 %v1118, 4294901760
    %v1120 = vsub.f32 %v1118, %v1119
    %v1121 = vand.u32 %v1120, 4294901760
    %1122 = vmatpush.msra.mxu0 %v1121
    %v1123 = vand.u32 %v993, 4294901760
    %v1124 = vsub.f32 %v993, %v1123
    %v1125 = vand.u32 %v1124, 4294901760
    %v1126 = vsub.f32 %v1124, %v1125
    %v1127 = vand.u32 %v1126, 4294901760
    %1128 = vmatpush.msra.mxu0 %v1127
    %v1129 = vand.u32 %v992, 4294901760
    %v1130 = vsub.f32 %v992, %v1129
    %v1131 = vand.u32 %v1130, 4294901760
    %v1132 = vsub.f32 %v1130, %v1131
    %v1133 = vand.u32 %v1132, 4294901760
    %1134 = vmatpush.msra.mxu0 %v1133
    %v1135 = vand.u32 %v991, 4294901760
    %v1136 = vsub.f32 %v991, %v1135
    %v1137 = vand.u32 %v1136, 4294901760
    %v1138 = vsub.f32 %v1136, %v1137
    %v1139 = vand.u32 %v1138, 4294901760
    %1140 = vmatpush.msra.mxu0 %v1139
    %v1141 = vand.u32 %v990, 4294901760
    %v1142 = vsub.f32 %v990, %v1141
    %v1143 = vand.u32 %v1142, 4294901760
    %v1144 = vsub.f32 %v1142, %v1143
    %v1145 = vand.u32 %v1144, 4294901760
    %1146 = vmatpush.msra.mxu0 %v1145
    %v1147 = vand.u32 %v989, 4294901760
    %1148 = vmatmul.f32.gmra.mxu0 %v1147
    %v1149 = vpop.f32.mrf.mxu0
    %v1150 = vadd.f32 %v1049, %v1149
    %1151 = vdwg.mxu0
    %v1152 = vand.u32 %v1005, 4294901760
    %v1153 = vsub.f32 %v1005, %v1152
    %1154 = vmatpush.msra.mxu0 %v1153
    %v1155 = vand.u32 %v1004, 4294901760
    %v1156 = vsub.f32 %v1004, %v1155
    %1157 = vmatpush.msra.mxu0 %v1156
    %v1158 = vand.u32 %v1003, 4294901760
    %v1159 = vsub.f32 %v1003, %v1158
    %1160 = vmatpush.msra.mxu0 %v1159
    %v1161 = vand.u32 %v1002, 4294901760
    %v1162 = vsub.f32 %v1002, %v1161
    %1163 = vmatpush.msra.mxu0 %v1162
    %v1164 = vand.u32 %v1001, 4294901760
    %v1165 = vsub.f32 %v1001, %v1164
    %1166 = vmatpush.msra.mxu0 %v1165
    %v1167 = vand.u32 %v1000, 4294901760
    %v1168 = vsub.f32 %v1000, %v1167
    %1169 = vmatpush.msra.mxu0 %v1168
    %v1170 = vand.u32 %v999, 4294901760
    %v1171 = vsub.f32 %v999, %v1170
    %1172 = vmatpush.msra.mxu0 %v1171
    %v1173 = vand.u32 %v998, 4294901760
    %v1174 = vsub.f32 %v998, %v1173
    %1175 = vmatpush.msra.mxu0 %v1174
    %v1176 = vand.u32 %v997, 4294901760
    %v1177 = vsub.f32 %v997, %v1176
    %1178 = vmatpush.msra.mxu0 %v1177
    %v1179 = vand.u32 %v996, 4294901760
    %v1180 = vsub.f32 %v996, %v1179
    %1181 = vmatpush.msra.mxu0 %v1180
    %v1182 = vand.u32 %v995, 4294901760
    %v1183 = vsub.f32 %v995, %v1182
    %1184 = vmatpush.msra.mxu0 %v1183
    %v1185 = vand.u32 %v994, 4294901760
    %v1186 = vsub.f32 %v994, %v1185
    %1187 = vmatpush.msra.mxu0 %v1186
    %v1188 = vand.u32 %v993, 4294901760
    %v1189 = vsub.f32 %v993, %v1188
    %1190 = vmatpush.msra.mxu0 %v1189
    %v1191 = vand.u32 %v992, 4294901760
    %v1192 = vsub.f32 %v992, %v1191
    %1193 = vmatpush.msra.mxu0 %v1192
    %v1194 = vand.u32 %v991, 4294901760
    %v1195 = vsub.f32 %v991, %v1194
    %1196 = vmatpush.msra.mxu0 %v1195
    %v1197 = vand.u32 %v990, 4294901760
    %v1198 = vsub.f32 %v990, %v1197
    %1199 = vmatpush.msra.mxu0 %v1198
    %v1200 = vand.u32 %v989, 4294901760
    %v1201 = vsub.f32 %v989, %v1200
    %1202 = vmatmul.f32.gmra.mxu0 %v1201
    %v1203 = vpop.f32.mrf.mxu0
    %v1204 = vadd.f32 %v1150, %v1203
    %1205 = vdwg.mxu0
    %v1206 = vand.u32 %v1005, 4294901760
    %1207 = vmatpush.msra.mxu0 %v1206
    %v1208 = vand.u32 %v1004, 4294901760
    %1209 = vmatpush.msra.mxu0 %v1208
    %v1210 = vand.u32 %v1003, 4294901760
    %1211 = vmatpush.msra.mxu0 %v1210
    %v1212 = vand.u32 %v1002, 4294901760
    %1213 = vmatpush.msra.mxu0 %v1212
    %v1214 = vand.u32 %v1001, 4294901760
    %1215 = vmatpush.msra.mxu0 %v1214
    %v1216 = vand.u32 %v1000, 4294901760
    %1217 = vmatpush.msra.mxu0 %v1216
    %v1218 = vand.u32 %v999, 4294901760
    %1219 = vmatpush.msra.mxu0 %v1218
    %v1220 = vand.u32 %v998, 4294901760
    %1221 = vmatpush.msra.mxu0 %v1220
    %v1222 = vand.u32 %v997, 4294901760
    %1223 = vmatpush.msra.mxu0 %v1222
    %v1224 = vand.u32 %v996, 4294901760
    %1225 = vmatpush.msra.mxu0 %v1224
    %v1226 = vand.u32 %v995, 4294901760
    %1227 = vmatpush.msra.mxu0 %v1226
    %v1228 = vand.u32 %v994, 4294901760
    %1229 = vmatpush.msra.mxu0 %v1228
    %v1230 = vand.u32 %v993, 4294901760
    %1231 = vmatpush.msra.mxu0 %v1230
    %v1232 = vand.u32 %v992, 4294901760
    %1233 = vmatpush.msra.mxu0 %v1232
    %v1234 = vand.u32 %v991, 4294901760
    %1235 = vmatpush.msra.mxu0 %v1234
    %v1236 = vand.u32 %v990, 4294901760
    %1237 = vmatpush.msra.mxu0 %v1236
    %v1238 = vand.u32 %v989, 4294901760
    %v1239 = vsub.f32 %v989, %v1238
    %v1240 = vand.u32 %v1239, 4294901760
    %1241 = vmatmul.f32.gmra.mxu0 %v1240
    %v1242 = vpop.f32.mrf.mxu0
    %v1243 = vadd.f32 %v1204, %v1242
    %1244 = vdwg.mxu0
    %v1245 = vand.u32 %v1005, 4294901760
    %v1246 = vsub.f32 %v1005, %v1245
    %v1247 = vand.u32 %v1246, 4294901760
    %1248 = vmatpush.msra.mxu0 %v1247
    %v1249 = vand.u32 %v1004, 4294901760
    %v1250 = vsub.f32 %v1004, %v1249
    %v1251 = vand.u32 %v1250, 4294901760
    %1252 = vmatpush.msra.mxu0 %v1251
    %v1253 = vand.u32 %v1003, 4294901760
    %v1254 = vsub.f32 %v1003, %v1253
    %v1255 = vand.u32 %v1254, 4294901760
    %1256 = vmatpush.msra.mxu0 %v1255
    %v1257 = vand.u32 %v1002, 4294901760
    %v1258 = vsub.f32 %v1002, %v1257
    %v1259 = vand.u32 %v1258, 4294901760
    %1260 = vmatpush.msra.mxu0 %v1259
    %v1261 = vand.u32 %v1001, 4294901760
    %v1262 = vsub.f32 %v1001, %v1261
    %v1263 = vand.u32 %v1262, 4294901760
    %1264 = vmatpush.msra.mxu0 %v1263
    %v1265 = vand.u32 %v1000, 4294901760
    %v1266 = vsub.f32 %v1000, %v1265
    %v1267 = vand.u32 %v1266, 4294901760
    %1268 = vmatpush.msra.mxu0 %v1267
    %v1269 = vand.u32 %v999, 4294901760
    %v1270 = vsub.f32 %v999, %v1269
    %v1271 = vand.u32 %v1270, 4294901760
    %1272 = vmatpush.msra.mxu0 %v1271
    %v1273 = vand.u32 %v998, 4294901760
    %v1274 = vsub.f32 %v998, %v1273
    %v1275 = vand.u32 %v1274, 4294901760
    %1276 = vmatpush.msra.mxu0 %v1275
    %v1277 = vand.u32 %v997, 4294901760
    %v1278 = vsub.f32 %v997, %v1277
    %v1279 = vand.u32 %v1278, 4294901760
    %1280 = vmatpush.msra.mxu0 %v1279
    %v1281 = vand.u32 %v996, 4294901760
    %v1282 = vsub.f32 %v996, %v1281
    %v1283 = vand.u32 %v1282, 4294901760
    %1284 = vmatpush.msra.mxu0 %v1283
    %v1285 = vand.u32 %v995, 4294901760
    %v1286 = vsub.f32 %v995, %v1285
    %v1287 = vand.u32 %v1286, 4294901760
    %1288 = vmatpush.msra.mxu0 %v1287
    %v1289 = vand.u32 %v994, 4294901760
    %v1290 = vsub.f32 %v994, %v1289
    %v1291 = vand.u32 %v1290, 4294901760
    %1292 = vmatpush.msra.mxu0 %v1291
    %v1293 = vand.u32 %v993, 4294901760
    %v1294 = vsub.f32 %v993, %v1293
    %v1295 = vand.u32 %v1294, 4294901760
    %1296 = vmatpush.msra.mxu0 %v1295
    %v1297 = vand.u32 %v992, 4294901760
    %v1298 = vsub.f32 %v992, %v1297
    %v1299 = vand.u32 %v1298, 4294901760
    %1300 = vmatpush.msra.mxu0 %v1299
    %v1301 = vand.u32 %v991, 4294901760
    %v1302 = vsub.f32 %v991, %v1301
    %v1303 = vand.u32 %v1302, 4294901760
    %1304 = vmatpush.msra.mxu0 %v1303
    %v1305 = vand.u32 %v990, 4294901760
    %v1306 = vsub.f32 %v990, %v1305
    %v1307 = vand.u32 %v1306, 4294901760
    %1308 = vmatpush.msra.mxu0 %v1307
    %v1309 = vand.u32 %v989, 4294901760
    %1310 = vmatmul.f32.gmra.mxu0 %v1309
    %v1311 = vpop.f32.mrf.mxu0
    %v1312 = vadd.f32 %v1243, %v1311
    %1313 = vdwg.mxu0
    %v1314 = vand.u32 %v1005, 4294901760
    %1315 = vmatpush.msra.mxu0 %v1314
    %v1316 = vand.u32 %v1004, 4294901760
    %1317 = vmatpush.msra.mxu0 %v1316
    %v1318 = vand.u32 %v1003, 4294901760
    %1319 = vmatpush.msra.mxu0 %v1318
    %v1320 = vand.u32 %v1002, 4294901760
    %1321 = vmatpush.msra.mxu0 %v1320
    %v1322 = vand.u32 %v1001, 4294901760
    %1323 = vmatpush.msra.mxu0 %v1322
    %v1324 = vand.u32 %v1000, 4294901760
    %1325 = vmatpush.msra.mxu0 %v1324
    %v1326 = vand.u32 %v999, 4294901760
    %1327 = vmatpush.msra.mxu0 %v1326
    %v1328 = vand.u32 %v998, 4294901760
    %1329 = vmatpush.msra.mxu0 %v1328
    %v1330 = vand.u32 %v997, 4294901760
    %1331 = vmatpush.msra.mxu0 %v1330
    %v1332 = vand.u32 %v996, 4294901760
    %1333 = vmatpush.msra.mxu0 %v1332
    %v1334 = vand.u32 %v995, 4294901760
    %1335 = vmatpush.msra.mxu0 %v1334
    %v1336 = vand.u32 %v994, 4294901760
    %1337 = vmatpush.msra.mxu0 %v1336
    %v1338 = vand.u32 %v993, 4294901760
    %1339 = vmatpush.msra.mxu0 %v1338
    %v1340 = vand.u32 %v992, 4294901760
    %1341 = vmatpush.msra.mxu0 %v1340
    %v1342 = vand.u32 %v991, 4294901760
    %1343 = vmatpush.msra.mxu0 %v1342
    %v1344 = vand.u32 %v990, 4294901760
    %1345 = vmatpush.msra.mxu0 %v1344
    %v1346 = vand.u32 %v989, 4294901760
    %1347 = vmatmul.f32.gmra.mxu0 %v1346
    %v1348 = vpop.f32.mrf.mxu0
    %v1349 = vadd.f32 %v1312, %v1348
    %1350 = vdwg.mxu0
    %v1351 = vmax.f32 %v1349, 0.0
    %1352 = vst [vmem:[#allocation13] sm:$0xff] %v1351
    // Predicated region
    $region62: #{tpu_custom_call.1} parent=1 // pred_check
      _
    $region63: #{tpu_custom_call.1} parent=1 // pred_check_branch
      %1354 = sbr.rel (0) target = $region65
    $region64: #{tpu_custom_call.1} parent=1 // pred_region
      %1356 = vsyncadd [#allocation4], 0
      %s1358 = sshll.u32 [#allocation13], 4
      %s1359 = int_to_ptr.vmem [resolvable:$true] %s1358
      %s1360 = sshll.u32 %s9, 4
      %s1361 = int_to_ptr.hbm [resolvable:$true] %s1360
      %1363 = dma.vmem_to_hbm [thread:$0]  %s1359, 128, %s1361, [#allocation4]
    $region65: #{tpu_custom_call.1} parent=1 // pred_fallthru
      _
    // Predicated region
    $region66: #{tpu_custom_call.1} parent=1 // pred_check
      _
    $region67: #{tpu_custom_call.1} parent=1 // pred_check_branch
      %1365 = sbr.rel (0) target = $region69
    $region68: #{tpu_custom_call.1} parent=1 // pred_region
      %1367 = dma.done [#allocation4], 128
    $region69: #{tpu_custom_call.1} parent=1 // pred_fallthru
      _
    %1368 = vsyncpa [#allocation3], 1
    %1369 = vsyncpa [#allocation6], 1
    %1370 = vsyncpa [#allocation9], 1
    %1371 = vsyncpa [#allocation12], 1
    %1372 = vsyncpa [#allocation4], 1

</llo_original>
